<compile_context>
chip_gen: v7x
topology: tpu7x:2x2x1
jax: 0.10.0
libtpu: 0.0.40
codegen_flags: <defaults>
</compile_context>

<pallas_src>
import jax
import jax.numpy as jnp
from jax.experimental import pallas as pl
from jax.experimental.pallas import tpu as pltpu

BN_EPS = 1e-5


def _cdiv(a, b):
    return (a + b - 1) // b


def _round_up(n, m):
    return ((n + m - 1) // m) * m


def _leaky_relu(x, slope=0.2):
    # one vmul + one vmax (instead of cmp + select + mul)
    return jnp.maximum(x, slope * x)


def _sigmoid(x):
    # exact: the forward() applies sigmoid twice, so avoid compounding
    # approx-reciprocal error.  exp runs on the EUP slot anyway.
    return 1.0 / (1.0 + jnp.exp(-x))


def mlp_classifier_kernel(
    x_ref,
    w1_ref, b1_ref,     # feature_net Linear(D,256)    (BN folded in)
    w2_ref, b2_ref,     # feature_net Linear(256,128)  (BN folded in)
    wa1_ref, ba1_ref,   # attention  Linear(128,128)
    wa2_ref, ba2_ref,   # attention  Linear(128,128)
    wc1_ref, bc1_ref,   # classifier Linear(128,128)   (BN folded in)
    wc2_ref, bc2_ref,   # classifier Linear(128,C_pad) (zero-padded to 128 lanes)
    o_ref,
):
    x = x_ref[...]

    # ---- feature_net (Linear+BN folded, LeakyReLU, Dropout -> identity) ----
    h = jnp.dot(x.astype(jnp.bfloat16), w1_ref[...],
                preferred_element_type=jnp.float32) + b1_ref[...]
    h = _leaky_relu(h)
    h = jnp.dot(h.astype(jnp.bfloat16), w2_ref[...],
                preferred_element_type=jnp.float32) + b2_ref[...]
    feats = _leaky_relu(h)

    # ---- attention ----
    a = jnp.dot(feats.astype(jnp.bfloat16), wa1_ref[...],
                preferred_element_type=jnp.float32) + ba1_ref[...]
    a = jnp.maximum(a, 0.0)                     # ReLU
    a = jnp.dot(a.astype(jnp.bfloat16), wa2_ref[...],
                preferred_element_type=jnp.float32) + ba2_ref[...]
    a = _sigmoid(a)                             # nn.Sigmoid inside Sequential
    a = _sigmoid(a)                             # extra torch.sigmoid() in forward()

    weighted = feats * a

    # ---- classifier (Linear+BN folded, LeakyReLU, Dropout -> identity) ----
    c = jnp.dot(weighted.astype(jnp.bfloat16), wc1_ref[...],
                preferred_element_type=jnp.float32) + bc1_ref[...]
    c = _leaky_relu(c)
    logits = jnp.dot(c.astype(jnp.bfloat16), wc2_ref[...],
                     preferred_element_type=jnp.float32) + bc2_ref[...]
    o_ref[...] = logits.astype(o_ref.dtype)


def _fold_bn(w, b, gamma, beta, mean, var, eps=BN_EPS):
    """Fold eval-mode BatchNorm into the preceding Linear (w: [in,out])."""
    scale = gamma * jax.lax.rsqrt(var + eps)       # (1, out)
    return w * scale, (b - mean) * scale + beta


def prepare_params(p):
    """Fold the three BatchNorms, pad classifier output to 128 lanes,
    cast weights to bf16 (biases stay f32)."""
    w1, b1 = _fold_bn(p["w1"], p["b1"], p["g1"], p["be1"], p["m1"], p["v1"])
    w2, b2 = _fold_bn(p["w2"], p["b2"], p["g2"], p["be2"], p["m2"], p["v2"])
    wc1, bc1 = _fold_bn(p["wc1"], p["bc1"], p["g3"], p["be3"], p["m3"], p["v3"])

    # lane-dense output: zero-pad the last Linear from C columns to >=128.
    C = p["wc2"].shape[1]
    C_pad = max(_round_up(C, 128), 128)
    wc2 = jnp.pad(p["wc2"], ((0, 0), (0, C_pad - C)))
    bc2 = jnp.pad(p["bc2"], ((0, 0), (0, C_pad - C)))

    q = {
        "w1": w1, "b1": b1, "w2": w2, "b2": b2,
        "wa1": p["wa1"], "ba1": p["ba1"], "wa2": p["wa2"], "ba2": p["ba2"],
        "wc1": wc1, "bc1": bc1, "wc2": wc2, "bc2": bc2,
        "num_classes": C,
    }
    for k in ("w1", "w2", "wa1", "wa2", "wc1", "wc2"):
        q[k] = q[k].astype(jnp.bfloat16)
    return q


def _choose_tiling(B, tile_b_max, align=256, min_steps=2):
    """Pick (tile_b, padded_B, n_steps): balanced tiles, 256-aligned,
    >=2 steps when B > align (keeps both v7x TensorCores busy)."""
    if B <= align:
        tb = _round_up(max(B, 1), 8)     # tiny batch: minimal sublane padding
        return tb, tb, 1
    n_steps = max(_cdiv(B, tile_b_max), min_steps)
    tb = _round_up(_cdiv(B, n_steps), align)
    n_steps = _cdiv(B, tb)
    return tb, n_steps * tb, n_steps


def _build_call(args, tb, B_pad, C_pad, D, vmem_limit, cost, single_buffer_weights):
    def pinned(a):
        if single_buffer_weights:
            return pl.BlockSpec(a.shape, lambda i: (0, 0),
                                pipeline_mode=pl.Buffered(1))
        return pl.BlockSpec(a.shape, lambda i: (0, 0))

    in_specs = [pl.BlockSpec((tb, D), lambda i: (i, 0))] + [pinned(a) for a in args[1:]]
    out_specs = pl.BlockSpec((tb, C_pad), lambda i: (i, 0))

    return pl.pallas_call(
        mlp_classifier_kernel,
        grid=(B_pad // tb,),
        in_specs=in_specs,
        out_specs=out_specs,
        out_shape=jax.ShapeDtypeStruct((B_pad, C_pad), jnp.float32),
        compiler_params=pltpu.CompilerParams(
            dimension_semantics=("parallel",),
            vmem_limit_bytes=vmem_limit),
        cost_estimate=cost,
    )


def mlp_classifier_forward(x, fp, tile_b=1024):
    """x: [B, D] float32 or bfloat16. fp: prepared params. Returns [B, C] f32."""
    B, D = x.shape
    C = fp["num_classes"]
    C_pad = fp["wc2"].shape[1]

    # Keep double-buffered x + intermediates comfortably under ~24 MiB
    # (v7x-safe: 64 MiB physical / 32 MiB scoped default).
    bytes_per_row = (2 * D * x.dtype.itemsize          # x double buffer
                     + (256 + 4 * 128 + C_pad) * 4     # f32 activations
                     + 2 * C_pad * 4)                  # out double buffer
    tile_cap = max(256, ((24 << 20) // bytes_per_row) // 256 * 256)
    tb, B_pad, _ = _choose_tiling(B, min(tile_b, tile_cap))

    if B_pad != B:
        x = jnp.pad(x, ((0, B_pad - B), (0, 0)))

    args = (
        x,
        fp["w1"], fp["b1"], fp["w2"], fp["b2"],
        fp["wa1"], fp["ba1"], fp["wa2"], fp["ba2"],
        fp["wc1"], fp["bc1"], fp["wc2"], fp["bc2"],
    )

    weight_bytes = sum(a.size * a.dtype.itemsize for a in args[1:])
    vmem_est = (2 * weight_bytes                 # worst case: double-buffered weights
                + tb * bytes_per_row
                + (4 << 20))                     # headroom
    vmem_limit = int(min(max(vmem_est, 32 << 20), 64 << 20))

    flops = 2 * B_pad * (D * 256 + 256 * 128 + 3 * 128 * 128 + 128 * C_pad)
    transcendentals = 4 * B_pad * 128            # 2x exp + 2x reciprocal
    bytes_accessed = (x.size * x.dtype.itemsize + weight_bytes + B_pad * C_pad * 4)
    cost = pl.CostEstimate(flops=flops, transcendentals=transcendentals,
                           bytes_accessed=bytes_accessed)

    try:
        out = _build_call(args, tb, B_pad, C_pad, D, vmem_limit, cost,
                          single_buffer_weights=True)(*args)
    except Exception:
        # Older JAX versions may reject pipeline_mode=pl.Buffered(1); the extra
        # weight buffer only costs a few hundred KB here, so fall back.
        out = _build_call(args, tb, B_pad, C_pad, D, vmem_limit, cost,
                          single_buffer_weights=False)(*args)
    return out[:B, :C]


def mlp_classifier_reference(x, fp):
    """Pure-JAX reference on the same folded/bf16/padded params."""
    def lin(h, w, b):
        return jnp.dot(h.astype(jnp.bfloat16), w,
                       preferred_element_type=jnp.float32) + b

    lrelu = lambda t: jnp.maximum(t, 0.2 * t)
    h = lrelu(lin(x, fp["w1"], fp["b1"]))
    feats = lrelu(lin(h, fp["w2"], fp["b2"]))
    a = jnp.maximum(lin(feats, fp["wa1"], fp["ba1"]), 0.0)
    a = jax.nn.sigmoid(jax.nn.sigmoid(lin(a, fp["wa2"], fp["ba2"])))
    c = lrelu(lin(feats * a, fp["wc1"], fp["bc1"]))
    return lin(c, fp["wc2"], fp["bc2"])[:, :fp["num_classes"]]


def init_params(key, input_dim, num_classes=1):
    """Deterministic synthetic parameters. Linear weights stored as [in, out]."""
    ks = iter(jax.random.split(key, 32))

    def lin(d_in, d_out, scale=0.05):
        w = scale * jax.random.normal(next(ks), (d_in, d_out), jnp.float32)
        b = scale * jax.random.normal(next(ks), (1, d_out), jnp.float32)
        return w, b

    def bn(d):
        g = 1.0 + 0.1 * jax.random.normal(next(ks), (1, d), jnp.float32)
        be = 0.1 * jax.random.normal(next(ks), (1, d), jnp.float32)
        m = 0.1 * jax.random.normal(next(ks), (1, d), jnp.float32)
        v = jnp.abs(1.0 + 0.1 * jax.random.normal(next(ks), (1, d), jnp.float32))
        return g, be, m, v

    p = {}
    p["w1"], p["b1"] = lin(input_dim, 256)
    p["g1"], p["be1"], p["m1"], p["v1"] = bn(256)
    p["w2"], p["b2"] = lin(256, 128)
    p["g2"], p["be2"], p["m2"], p["v2"] = bn(128)
    p["wa1"], p["ba1"] = lin(128, 128)
    p["wa2"], p["ba2"] = lin(128, 128)
    p["wc1"], p["bc1"] = lin(128, 128)
    p["g3"], p["be3"], p["m3"], p["v3"] = bn(128)
    p["wc2"], p["bc2"] = lin(128, num_classes)
    return p


if __name__ == "__main__":
    key = jax.random.PRNGKey(0)
    k_x, k_p = jax.random.split(key)

    BATCH = 8
    INPUT_DIM = 256   # synthetic stand-in for the mfcc/spec/cqt stat features
    NUM_CLASSES = 1

    x = jax.random.normal(k_x, (BATCH, INPUT_DIM), jnp.float32)
    raw_params = init_params(k_p, INPUT_DIM, NUM_CLASSES)
    fparams = prepare_params(raw_params)

    logits = mlp_classifier_forward(x, fparams)
    jax.block_until_ready(logits)
    assert logits.shape == (BATCH, NUM_CLASSES)
    assert bool(jnp.all(jnp.isfinite(logits)))

    ref = mlp_classifier_reference(x, fparams)
    assert bool(jnp.allclose(logits, ref, atol=2e-2, rtol=2e-2)), float(
        jnp.max(jnp.abs(logits - ref)))

    print("KERNEL_OK")
</pallas_src>

<mosaic_0001>
module attributes {stable_mosaic.version = 11 : i64} {
  func.func @mlp_classifier_kernel(%arg0: i32, %arg1: memref<8x256xf32, #tpu.memory_space<vmem>>, %arg2: memref<256x256xbf16, #tpu.memory_space<vmem>>, %arg3: memref<1x256xf32, #tpu.memory_space<vmem>>, %arg4: memref<256x128xbf16, #tpu.memory_space<vmem>>, %arg5: memref<1x128xf32, #tpu.memory_space<vmem>>, %arg6: memref<128x128xbf16, #tpu.memory_space<vmem>>, %arg7: memref<1x128xf32, #tpu.memory_space<vmem>>, %arg8: memref<128x128xbf16, #tpu.memory_space<vmem>>, %arg9: memref<1x128xf32, #tpu.memory_space<vmem>>, %arg10: memref<128x128xbf16, #tpu.memory_space<vmem>>, %arg11: memref<1x128xf32, #tpu.memory_space<vmem>>, %arg12: memref<128x128xbf16, #tpu.memory_space<vmem>>, %arg13: memref<1x128xf32, #tpu.memory_space<vmem>>, %arg14: memref<8x128xf32, #tpu.memory_space<vmem>>) attributes {dimension_semantics = [#tpu.dimension_semantics<parallel>], iteration_bounds = array<i64: 1>, scalar_prefetch = 0 : i64, scratch_operands = 0 : i64, tpu.core_type = #tpu.core_type<tc>, window_params = [{transform_indices = @transform_0, window_bounds = array<i64: 8, 256>}, {pipeline_mode = #tpu.pipeline_mode<synchronous>, transform_indices = @transform_1, window_bounds = array<i64: 256, 256>}, {pipeline_mode = #tpu.pipeline_mode<synchronous>, transform_indices = @transform_2, window_bounds = array<i64: 1, 256>}, {pipeline_mode = #tpu.pipeline_mode<synchronous>, transform_indices = @transform_3, window_bounds = array<i64: 256, 128>}, {pipeline_mode = #tpu.pipeline_mode<synchronous>, transform_indices = @transform_4, window_bounds = array<i64: 1, 128>}, {pipeline_mode = #tpu.pipeline_mode<synchronous>, transform_indices = @transform_5, window_bounds = array<i64: 128, 128>}, {pipeline_mode = #tpu.pipeline_mode<synchronous>, transform_indices = @transform_6, window_bounds = array<i64: 1, 128>}, {pipeline_mode = #tpu.pipeline_mode<synchronous>, transform_indices = @transform_7, window_bounds = array<i64: 128, 128>}, {pipeline_mode = #tpu.pipeline_mode<synchronous>, transform_indices = @transform_8, window_bounds = array<i64: 1, 128>}, {pipeline_mode = #tpu.pipeline_mode<synchronous>, transform_indices = @transform_9, window_bounds = array<i64: 128, 128>}, {pipeline_mode = #tpu.pipeline_mode<synchronous>, transform_indices = @transform_10, window_bounds = array<i64: 1, 128>}, {pipeline_mode = #tpu.pipeline_mode<synchronous>, transform_indices = @transform_11, window_bounds = array<i64: 128, 128>}, {pipeline_mode = #tpu.pipeline_mode<synchronous>, transform_indices = @transform_12, window_bounds = array<i64: 1, 128>}, {transform_indices = @transform_13, window_bounds = array<i64: 8, 128>}]} {
    %c0 = arith.constant 0 : index
    %c0_0 = arith.constant 0 : index
    %0 = vector.load %arg1[%c0, %c0_0] : memref<8x256xf32, #tpu.memory_space<vmem>>, vector<8x256xf32>
    %1 = arith.truncf %0 : vector<8x256xf32> to vector<8x256xbf16>
    %c0_1 = arith.constant 0 : index
    %c0_2 = arith.constant 0 : index
    %2 = vector.load %arg2[%c0_1, %c0_2] : memref<256x256xbf16, #tpu.memory_space<vmem>>, vector<256x256xbf16>
    %cst = arith.constant dense<0.000000e+00> : vector<8x256xf32>
    %3 = tpu.matmul %1, %2, %cst {dimension_numbers = #tpu.dot_dimension_numbers<[1], [0], [0], [1], [0, 0, 1, 1], [], []>} : vector<8x256xbf16>, vector<256x256xbf16>, vector<8x256xf32> -> vector<8x256xf32>
    %c0_3 = arith.constant 0 : index
    %c0_4 = arith.constant 0 : index
    %4 = vector.load %arg3[%c0_3, %c0_4] : memref<1x256xf32, #tpu.memory_space<vmem>>, vector<1x256xf32>
    %5 = vector.broadcast %4 : vector<1x256xf32> to vector<8x256xf32>
    %6 = arith.addf %3, %5 : vector<8x256xf32>
    %cst_5 = arith.constant 2.000000e-01 : f32
    %7 = vector.broadcast %cst_5 : f32 to vector<8x256xf32>
    %8 = arith.mulf %7, %6 : vector<8x256xf32>
    %9 = arith.maximumf %6, %8 : vector<8x256xf32>
    %10 = arith.truncf %9 : vector<8x256xf32> to vector<8x256xbf16>
    %c0_6 = arith.constant 0 : index
    %c0_7 = arith.constant 0 : index
    %11 = vector.load %arg4[%c0_6, %c0_7] : memref<256x128xbf16, #tpu.memory_space<vmem>>, vector<256x128xbf16>
    %cst_8 = arith.constant dense<0.000000e+00> : vector<8x128xf32>
    %12 = tpu.matmul %10, %11, %cst_8 {dimension_numbers = #tpu.dot_dimension_numbers<[1], [0], [0], [1], [0, 0, 1, 1], [], []>} : vector<8x256xbf16>, vector<256x128xbf16>, vector<8x128xf32> -> vector<8x128xf32>
    %c0_9 = arith.constant 0 : index
    %c0_10 = arith.constant 0 : index
    %13 = vector.load %arg5[%c0_9, %c0_10] : memref<1x128xf32, #tpu.memory_space<vmem>>, vector<1x128xf32>
    %14 = vector.broadcast %13 : vector<1x128xf32> to vector<8x128xf32>
    %15 = arith.addf %12, %14 : vector<8x128xf32>
    %cst_11 = arith.constant 2.000000e-01 : f32
    %16 = vector.broadcast %cst_11 : f32 to vector<8x128xf32>
    %17 = arith.mulf %16, %15 : vector<8x128xf32>
    %18 = arith.maximumf %15, %17 : vector<8x128xf32>
    %19 = arith.truncf %18 : vector<8x128xf32> to vector<8x128xbf16>
    %c0_12 = arith.constant 0 : index
    %c0_13 = arith.constant 0 : index
    %20 = vector.load %arg6[%c0_12, %c0_13] : memref<128x128xbf16, #tpu.memory_space<vmem>>, vector<128x128xbf16>
    %cst_14 = arith.constant dense<0.000000e+00> : vector<8x128xf32>
    %21 = tpu.matmul %19, %20, %cst_14 {dimension_numbers = #tpu.dot_dimension_numbers<[1], [0], [0], [1], [0, 0, 1, 1], [], []>} : vector<8x128xbf16>, vector<128x128xbf16>, vector<8x128xf32> -> vector<8x128xf32>
    %c0_15 = arith.constant 0 : index
    %c0_16 = arith.constant 0 : index
    %22 = vector.load %arg7[%c0_15, %c0_16] : memref<1x128xf32, #tpu.memory_space<vmem>>, vector<1x128xf32>
    %23 = vector.broadcast %22 : vector<1x128xf32> to vector<8x128xf32>
    %24 = arith.addf %21, %23 : vector<8x128xf32>
    %cst_17 = arith.constant 0.000000e+00 : f32
    %25 = vector.broadcast %cst_17 : f32 to vector<8x128xf32>
    %26 = arith.maximumf %24, %25 : vector<8x128xf32>
    %27 = arith.truncf %26 : vector<8x128xf32> to vector<8x128xbf16>
    %c0_18 = arith.constant 0 : index
    %c0_19 = arith.constant 0 : index
    %28 = vector.load %arg8[%c0_18, %c0_19] : memref<128x128xbf16, #tpu.memory_space<vmem>>, vector<128x128xbf16>
    %cst_20 = arith.constant dense<0.000000e+00> : vector<8x128xf32>
    %29 = tpu.matmul %27, %28, %cst_20 {dimension_numbers = #tpu.dot_dimension_numbers<[1], [0], [0], [1], [0, 0, 1, 1], [], []>} : vector<8x128xbf16>, vector<128x128xbf16>, vector<8x128xf32> -> vector<8x128xf32>
    %c0_21 = arith.constant 0 : index
    %c0_22 = arith.constant 0 : index
    %30 = vector.load %arg9[%c0_21, %c0_22] : memref<1x128xf32, #tpu.memory_space<vmem>>, vector<1x128xf32>
    %31 = vector.broadcast %30 : vector<1x128xf32> to vector<8x128xf32>
    %32 = arith.addf %29, %31 : vector<8x128xf32>
    %cst_23 = arith.constant 0.000000e+00 : f32
    %33 = vector.broadcast %cst_23 : f32 to vector<8x128xf32>
    %34 = arith.subf %33, %32 : vector<8x128xf32>
    %35 = math.exp %34 : vector<8x128xf32>
    %cst_24 = arith.constant 1.000000e+00 : f32
    %36 = vector.broadcast %cst_24 : f32 to vector<8x128xf32>
    %37 = arith.addf %36, %35 : vector<8x128xf32>
    %cst_25 = arith.constant 1.000000e+00 : f32
    %38 = vector.broadcast %cst_25 : f32 to vector<8x128xf32>
    %39 = arith.divf %38, %37 : vector<8x128xf32>
    %cst_26 = arith.constant 0.000000e+00 : f32
    %40 = vector.broadcast %cst_26 : f32 to vector<8x128xf32>
    %41 = arith.subf %40, %39 : vector<8x128xf32>
    %42 = math.exp %41 : vector<8x128xf32>
    %cst_27 = arith.constant 1.000000e+00 : f32
    %43 = vector.broadcast %cst_27 : f32 to vector<8x128xf32>
    %44 = arith.addf %43, %42 : vector<8x128xf32>
    %cst_28 = arith.constant 1.000000e+00 : f32
    %45 = vector.broadcast %cst_28 : f32 to vector<8x128xf32>
    %46 = arith.divf %45, %44 : vector<8x128xf32>
    %47 = arith.mulf %18, %46 : vector<8x128xf32>
    %48 = arith.truncf %47 : vector<8x128xf32> to vector<8x128xbf16>
    %c0_29 = arith.constant 0 : index
    %c0_30 = arith.constant 0 : index
    %49 = vector.load %arg10[%c0_29, %c0_30] : memref<128x128xbf16, #tpu.memory_space<vmem>>, vector<128x128xbf16>
    %cst_31 = arith.constant dense<0.000000e+00> : vector<8x128xf32>
    %50 = tpu.matmul %48, %49, %cst_31 {dimension_numbers = #tpu.dot_dimension_numbers<[1], [0], [0], [1], [0, 0, 1, 1], [], []>} : vector<8x128xbf16>, vector<128x128xbf16>, vector<8x128xf32> -> vector<8x128xf32>
    %c0_32 = arith.constant 0 : index
    %c0_33 = arith.constant 0 : index
    %51 = vector.load %arg11[%c0_32, %c0_33] : memref<1x128xf32, #tpu.memory_space<vmem>>, vector<1x128xf32>
    %52 = vector.broadcast %51 : vector<1x128xf32> to vector<8x128xf32>
    %53 = arith.addf %50, %52 : vector<8x128xf32>
    %cst_34 = arith.constant 2.000000e-01 : f32
    %54 = vector.broadcast %cst_34 : f32 to vector<8x128xf32>
    %55 = arith.mulf %54, %53 : vector<8x128xf32>
    %56 = arith.maximumf %53, %55 : vector<8x128xf32>
    %57 = arith.truncf %56 : vector<8x128xf32> to vector<8x128xbf16>
    %c0_35 = arith.constant 0 : index
    %c0_36 = arith.constant 0 : index
    %58 = vector.load %arg12[%c0_35, %c0_36] : memref<128x128xbf16, #tpu.memory_space<vmem>>, vector<128x128xbf16>
    %cst_37 = arith.constant dense<0.000000e+00> : vector<8x128xf32>
    %59 = tpu.matmul %57, %58, %cst_37 {dimension_numbers = #tpu.dot_dimension_numbers<[1], [0], [0], [1], [0, 0, 1, 1], [], []>} : vector<8x128xbf16>, vector<128x128xbf16>, vector<8x128xf32> -> vector<8x128xf32>
    %c0_38 = arith.constant 0 : index
    %c0_39 = arith.constant 0 : index
    %60 = vector.load %arg13[%c0_38, %c0_39] : memref<1x128xf32, #tpu.memory_space<vmem>>, vector<1x128xf32>
    %61 = vector.broadcast %60 : vector<1x128xf32> to vector<8x128xf32>
    %62 = arith.addf %59, %61 : vector<8x128xf32>
    %c0_40 = arith.constant 0 : index
    %c0_41 = arith.constant 0 : index
    %63 = vector.load %arg14[%c0_40, %c0_41] : memref<8x128xf32, #tpu.memory_space<vmem>>, vector<8x128xf32>
    tpu.vector_store %arg14[%c0_40, %c0_41], %62 {strides = array<i32>} : memref<8x128xf32, #tpu.memory_space<vmem>>, vector<8x128xf32>,
    return
  }
  func.func @transform_0(%arg0: i32) -> (i32, i32) {
    %c0_i32 = arith.constant 0 : i32
    %c0_i32_0 = arith.constant 0 : i32
    return %arg0, %c0_i32 : i32, i32
  }
  func.func @transform_1(%arg0: i32) -> (i32, i32) {
    %c0_i32 = arith.constant 0 : i32
    %c0_i32_0 = arith.constant 0 : i32
    %c0_i32_1 = arith.constant 0 : i32
    return %c0_i32, %c0_i32_0 : i32, i32
  }
  func.func @transform_2(%arg0: i32) -> (i32, i32) {
    %c0_i32 = arith.constant 0 : i32
    %c0_i32_0 = arith.constant 0 : i32
    %c0_i32_1 = arith.constant 0 : i32
    return %c0_i32, %c0_i32_0 : i32, i32
  }
  func.func @transform_3(%arg0: i32) -> (i32, i32) {
    %c0_i32 = arith.constant 0 : i32
    %c0_i32_0 = arith.constant 0 : i32
    %c0_i32_1 = arith.constant 0 : i32
    return %c0_i32, %c0_i32_0 : i32, i32
  }
  func.func @transform_4(%arg0: i32) -> (i32, i32) {
    %c0_i32 = arith.constant 0 : i32
    %c0_i32_0 = arith.constant 0 : i32
    %c0_i32_1 = arith.constant 0 : i32
    return %c0_i32, %c0_i32_0 : i32, i32
  }
  func.func @transform_5(%arg0: i32) -> (i32, i32) {
    %c0_i32 = arith.constant 0 : i32
    %c0_i32_0 = arith.constant 0 : i32
    %c0_i32_1 = arith.constant 0 : i32
    return %c0_i32, %c0_i32_0 : i32, i32
  }
  func.func @transform_6(%arg0: i32) -> (i32, i32) {
    %c0_i32 = arith.constant 0 : i32
    %c0_i32_0 = arith.constant 0 : i32
    %c0_i32_1 = arith.constant 0 : i32
    return %c0_i32, %c0_i32_0 : i32, i32
  }
  func.func @transform_7(%arg0: i32) -> (i32, i32) {
    %c0_i32 = arith.constant 0 : i32
    %c0_i32_0 = arith.constant 0 : i32
    %c0_i32_1 = arith.constant 0 : i32
    return %c0_i32, %c0_i32_0 : i32, i32
  }
  func.func @transform_8(%arg0: i32) -> (i32, i32) {
    %c0_i32 = arith.constant 0 : i32
    %c0_i32_0 = arith.constant 0 : i32
    %c0_i32_1 = arith.constant 0 : i32
    return %c0_i32, %c0_i32_0 : i32, i32
  }
  func.func @transform_9(%arg0: i32) -> (i32, i32) {
    %c0_i32 = arith.constant 0 : i32
    %c0_i32_0 = arith.constant 0 : i32
    %c0_i32_1 = arith.constant 0 : i32
    return %c0_i32, %c0_i32_0 : i32, i32
  }
  func.func @transform_10(%arg0: i32) -> (i32, i32) {
    %c0_i32 = arith.constant 0 : i32
    %c0_i32_0 = arith.constant 0 : i32
    %c0_i32_1 = arith.constant 0 : i32
    return %c0_i32, %c0_i32_0 : i32, i32
  }
  func.func @transform_11(%arg0: i32) -> (i32, i32) {
    %c0_i32 = arith.constant 0 : i32
    %c0_i32_0 = arith.constant 0 : i32
    %c0_i32_1 = arith.constant 0 : i32
    return %c0_i32, %c0_i32_0 : i32, i32
  }
  func.func @transform_12(%arg0: i32) -> (i32, i32) {
    %c0_i32 = arith.constant 0 : i32
    %c0_i32_0 = arith.constant 0 : i32
    %c0_i32_1 = arith.constant 0 : i32
    return %c0_i32, %c0_i32_0 : i32, i32
  }
  func.func @transform_13(%arg0: i32) -> (i32, i32) {
    %c0_i32 = arith.constant 0 : i32
    %c0_i32_0 = arith.constant 0 : i32
    return %arg0, %c0_i32 : i32, i32
  }
}

module attributes {stable_mosaic.version = 11 : i64} {
  func.func @mlp_classifier_kernel(%arg0: i32, %arg1: memref<8x256xf32, #tpu.memory_space<vmem>>, %arg2: memref<256x256xbf16, #tpu.memory_space<vmem>>, %arg3: memref<1x256xf32, #tpu.memory_space<vmem>>, %arg4: memref<256x128xbf16, #tpu.memory_space<vmem>>, %arg5: memref<1x128xf32, #tpu.memory_space<vmem>>, %arg6: memref<128x128xbf16, #tpu.memory_space<vmem>>, %arg7: memref<1x128xf32, #tpu.memory_space<vmem>>, %arg8: memref<128x128xbf16, #tpu.memory_space<vmem>>, %arg9: memref<1x128xf32, #tpu.memory_space<vmem>>, %arg10: memref<128x128xbf16, #tpu.memory_space<vmem>>, %arg11: memref<1x128xf32, #tpu.memory_space<vmem>>, %arg12: memref<128x128xbf16, #tpu.memory_space<vmem>>, %arg13: memref<1x128xf32, #tpu.memory_space<vmem>>, %arg14: memref<8x128xf32, #tpu.memory_space<vmem>>) attributes {dimension_semantics = [#tpu.dimension_semantics<parallel>], iteration_bounds = array<i64: 1>, scalar_prefetch = 0 : i64, scratch_operands = 0 : i64, tpu.core_type = #tpu.core_type<tc>, window_params = [{transform_indices = @transform_0, window_bounds = array<i64: 8, 256>}, {pipeline_mode = #tpu.pipeline_mode<synchronous>, transform_indices = @transform_1, window_bounds = array<i64: 256, 256>}, {pipeline_mode = #tpu.pipeline_mode<synchronous>, transform_indices = @transform_2, window_bounds = array<i64: 1, 256>}, {pipeline_mode = #tpu.pipeline_mode<synchronous>, transform_indices = @transform_3, window_bounds = array<i64: 256, 128>}, {pipeline_mode = #tpu.pipeline_mode<synchronous>, transform_indices = @transform_4, window_bounds = array<i64: 1, 128>}, {pipeline_mode = #tpu.pipeline_mode<synchronous>, transform_indices = @transform_5, window_bounds = array<i64: 128, 128>}, {pipeline_mode = #tpu.pipeline_mode<synchronous>, transform_indices = @transform_6, window_bounds = array<i64: 1, 128>}, {pipeline_mode = #tpu.pipeline_mode<synchronous>, transform_indices = @transform_7, window_bounds = array<i64: 128, 128>}, {pipeline_mode = #tpu.pipeline_mode<synchronous>, transform_indices = @transform_8, window_bounds = array<i64: 1, 128>}, {pipeline_mode = #tpu.pipeline_mode<synchronous>, transform_indices = @transform_9, window_bounds = array<i64: 128, 128>}, {pipeline_mode = #tpu.pipeline_mode<synchronous>, transform_indices = @transform_10, window_bounds = array<i64: 1, 128>}, {pipeline_mode = #tpu.pipeline_mode<synchronous>, transform_indices = @transform_11, window_bounds = array<i64: 128, 128>}, {pipeline_mode = #tpu.pipeline_mode<synchronous>, transform_indices = @transform_12, window_bounds = array<i64: 1, 128>}, {transform_indices = @transform_13, window_bounds = array<i64: 8, 128>}]} {
    %c0 = arith.constant 0 : index
    %c0_0 = arith.constant 0 : index
    %0 = vector.load %arg1[%c0, %c0_0] : memref<8x256xf32, #tpu.memory_space<vmem>>, vector<8x256xf32>
    %1 = arith.truncf %0 : vector<8x256xf32> to vector<8x256xbf16>
    %c0_1 = arith.constant 0 : index
    %c0_2 = arith.constant 0 : index
    %2 = vector.load %arg2[%c0_1, %c0_2] : memref<256x256xbf16, #tpu.memory_space<vmem>>, vector<256x256xbf16>
    %cst = arith.constant dense<0.000000e+00> : vector<8x256xf32>
    %3 = tpu.matmul %1, %2, %cst {dimension_numbers = #tpu.dot_dimension_numbers<[1], [0], [0], [1], [0, 0, 1, 1], [], []>} : vector<8x256xbf16>, vector<256x256xbf16>, vector<8x256xf32> -> vector<8x256xf32>
    %c0_3 = arith.constant 0 : index
    %c0_4 = arith.constant 0 : index
    %4 = vector.load %arg3[%c0_3, %c0_4] : memref<1x256xf32, #tpu.memory_space<vmem>>, vector<1x256xf32>
    %5 = vector.broadcast %4 : vector<1x256xf32> to vector<8x256xf32>
    %6 = arith.addf %3, %5 : vector<8x256xf32>
    %cst_5 = arith.constant 2.000000e-01 : f32
    %7 = vector.broadcast %cst_5 : f32 to vector<8x256xf32>
    %8 = arith.mulf %7, %6 : vector<8x256xf32>
    %9 = arith.maximumf %6, %8 : vector<8x256xf32>
    %10 = arith.truncf %9 : vector<8x256xf32> to vector<8x256xbf16>
    %c0_6 = arith.constant 0 : index
    %c0_7 = arith.constant 0 : index
    %11 = vector.load %arg4[%c0_6, %c0_7] : memref<256x128xbf16, #tpu.memory_space<vmem>>, vector<256x128xbf16>
    %cst_8 = arith.constant dense<0.000000e+00> : vector<8x128xf32>
    %12 = tpu.matmul %10, %11, %cst_8 {dimension_numbers = #tpu.dot_dimension_numbers<[1], [0], [0], [1], [0, 0, 1, 1], [], []>} : vector<8x256xbf16>, vector<256x128xbf16>, vector<8x128xf32> -> vector<8x128xf32>
    %c0_9 = arith.constant 0 : index
    %c0_10 = arith.constant 0 : index
    %13 = vector.load %arg5[%c0_9, %c0_10] : memref<1x128xf32, #tpu.memory_space<vmem>>, vector<1x128xf32>
    %14 = vector.broadcast %13 : vector<1x128xf32> to vector<8x128xf32>
    %15 = arith.addf %12, %14 : vector<8x128xf32>
    %cst_11 = arith.constant 2.000000e-01 : f32
    %16 = vector.broadcast %cst_11 : f32 to vector<8x128xf32>
    %17 = arith.mulf %16, %15 : vector<8x128xf32>
    %18 = arith.maximumf %15, %17 : vector<8x128xf32>
    %19 = arith.truncf %18 : vector<8x128xf32> to vector<8x128xbf16>
    %c0_12 = arith.constant 0 : index
    %c0_13 = arith.constant 0 : index
    %20 = vector.load %arg6[%c0_12, %c0_13] : memref<128x128xbf16, #tpu.memory_space<vmem>>, vector<128x128xbf16>
    %cst_14 = arith.constant dense<0.000000e+00> : vector<8x128xf32>
    %21 = tpu.matmul %19, %20, %cst_14 {dimension_numbers = #tpu.dot_dimension_numbers<[1], [0], [0], [1], [0, 0, 1, 1], [], []>} : vector<8x128xbf16>, vector<128x128xbf16>, vector<8x128xf32> -> vector<8x128xf32>
    %c0_15 = arith.constant 0 : index
    %c0_16 = arith.constant 0 : index
    %22 = vector.load %arg7[%c0_15, %c0_16] : memref<1x128xf32, #tpu.memory_space<vmem>>, vector<1x128xf32>
    %23 = vector.broadcast %22 : vector<1x128xf32> to vector<8x128xf32>
    %24 = arith.addf %21, %23 : vector<8x128xf32>
    %cst_17 = arith.constant 0.000000e+00 : f32
    %25 = vector.broadcast %cst_17 : f32 to vector<8x128xf32>
    %26 = arith.maximumf %24, %25 : vector<8x128xf32>
    %27 = arith.truncf %26 : vector<8x128xf32> to vector<8x128xbf16>
    %c0_18 = arith.constant 0 : index
    %c0_19 = arith.constant 0 : index
    %28 = vector.load %arg8[%c0_18, %c0_19] : memref<128x128xbf16, #tpu.memory_space<vmem>>, vector<128x128xbf16>
    %cst_20 = arith.constant dense<0.000000e+00> : vector<8x128xf32>
    %29 = tpu.matmul %27, %28, %cst_20 {dimension_numbers = #tpu.dot_dimension_numbers<[1], [0], [0], [1], [0, 0, 1, 1], [], []>} : vector<8x128xbf16>, vector<128x128xbf16>, vector<8x128xf32> -> vector<8x128xf32>
    %c0_21 = arith.constant 0 : index
    %c0_22 = arith.constant 0 : index
    %30 = vector.load %arg9[%c0_21, %c0_22] : memref<1x128xf32, #tpu.memory_space<vmem>>, vector<1x128xf32>
    %31 = vector.broadcast %30 : vector<1x128xf32> to vector<8x128xf32>
    %32 = arith.addf %29, %31 : vector<8x128xf32>
    %cst_23 = arith.constant 0.000000e+00 : f32
    %33 = vector.broadcast %cst_23 : f32 to vector<8x128xf32>
    %34 = arith.subf %33, %32 : vector<8x128xf32>
    %35 = math.exp %34 : vector<8x128xf32>
    %cst_24 = arith.constant 1.000000e+00 : f32
    %36 = vector.broadcast %cst_24 : f32 to vector<8x128xf32>
    %37 = arith.addf %36, %35 : vector<8x128xf32>
    %cst_25 = arith.constant 1.000000e+00 : f32
    %38 = vector.broadcast %cst_25 : f32 to vector<8x128xf32>
    %39 = arith.divf %38, %37 : vector<8x128xf32>
    %cst_26 = arith.constant 0.000000e+00 : f32
    %40 = vector.broadcast %cst_26 : f32 to vector<8x128xf32>
    %41 = arith.subf %40, %39 : vector<8x128xf32>
    %42 = math.exp %41 : vector<8x128xf32>
    %cst_27 = arith.constant 1.000000e+00 : f32
    %43 = vector.broadcast %cst_27 : f32 to vector<8x128xf32>
    %44 = arith.addf %43, %42 : vector<8x128xf32>
    %cst_28 = arith.constant 1.000000e+00 : f32
    %45 = vector.broadcast %cst_28 : f32 to vector<8x128xf32>
    %46 = arith.divf %45, %44 : vector<8x128xf32>
    %47 = arith.mulf %18, %46 : vector<8x128xf32>
    %48 = arith.truncf %47 : vector<8x128xf32> to vector<8x128xbf16>
    %c0_29 = arith.constant 0 : index
    %c0_30 = arith.constant 0 : index
    %49 = vector.load %arg10[%c0_29, %c0_30] : memref<128x128xbf16, #tpu.memory_space<vmem>>, vector<128x128xbf16>
    %cst_31 = arith.constant dense<0.000000e+00> : vector<8x128xf32>
    %50 = tpu.matmul %48, %49, %cst_31 {dimension_numbers = #tpu.dot_dimension_numbers<[1], [0], [0], [1], [0, 0, 1, 1], [], []>} : vector<8x128xbf16>, vector<128x128xbf16>, vector<8x128xf32> -> vector<8x128xf32>
    %c0_32 = arith.constant 0 : index
    %c0_33 = arith.constant 0 : index
    %51 = vector.load %arg11[%c0_32, %c0_33] : memref<1x128xf32, #tpu.memory_space<vmem>>, vector<1x128xf32>
    %52 = vector.broadcast %51 : vector<1x128xf32> to vector<8x128xf32>
    %53 = arith.addf %50, %52 : vector<8x128xf32>
    %cst_34 = arith.constant 2.000000e-01 : f32
    %54 = vector.broadcast %cst_34 : f32 to vector<8x128xf32>
    %55 = arith.mulf %54, %53 : vector<8x128xf32>
    %56 = arith.maximumf %53, %55 : vector<8x128xf32>
    %57 = arith.truncf %56 : vector<8x128xf32> to vector<8x128xbf16>
    %c0_35 = arith.constant 0 : index
    %c0_36 = arith.constant 0 : index
    %58 = vector.load %arg12[%c0_35, %c0_36] : memref<128x128xbf16, #tpu.memory_space<vmem>>, vector<128x128xbf16>
    %cst_37 = arith.constant dense<0.000000e+00> : vector<8x128xf32>
    %59 = tpu.matmul %57, %58, %cst_37 {dimension_numbers = #tpu.dot_dimension_numbers<[1], [0], [0], [1], [0, 0, 1, 1], [], []>} : vector<8x128xbf16>, vector<128x128xbf16>, vector<8x128xf32> -> vector<8x128xf32>
    %c0_38 = arith.constant 0 : index
    %c0_39 = arith.constant 0 : index
    %60 = vector.load %arg13[%c0_38, %c0_39] : memref<1x128xf32, #tpu.memory_space<vmem>>, vector<1x128xf32>
    %61 = vector.broadcast %60 : vector<1x128xf32> to vector<8x128xf32>
    %62 = arith.addf %59, %61 : vector<8x128xf32>
    %c0_40 = arith.constant 0 : index
    %c0_41 = arith.constant 0 : index
    %63 = vector.load %arg14[%c0_40, %c0_41] : memref<8x128xf32, #tpu.memory_space<vmem>>, vector<8x128xf32>
    tpu.vector_store %arg14[%c0_40, %c0_41], %62 {strides = array<i32>} : memref<8x128xf32, #tpu.memory_space<vmem>>, vector<8x128xf32>,
    return
  }
  func.func @transform_0(%arg0: i32) -> (i32, i32) {
    %c0_i32 = arith.constant 0 : i32
    %c0_i32_0 = arith.constant 0 : i32
    return %arg0, %c0_i32 : i32, i32
  }
  func.func @transform_1(%arg0: i32) -> (i32, i32) {
    %c0_i32 = arith.constant 0 : i32
    %c0_i32_0 = arith.constant 0 : i32
    %c0_i32_1 = arith.constant 0 : i32
    return %c0_i32, %c0_i32_0 : i32, i32
  }
  func.func @transform_2(%arg0: i32) -> (i32, i32) {
    %c0_i32 = arith.constant 0 : i32
    %c0_i32_0 = arith.constant 0 : i32
    %c0_i32_1 = arith.constant 0 : i32
    return %c0_i32, %c0_i32_0 : i32, i32
  }
  func.func @transform_3(%arg0: i32) -> (i32, i32) {
    %c0_i32 = arith.constant 0 : i32
    %c0_i32_0 = arith.constant 0 : i32
    %c0_i32_1 = arith.constant 0 : i32
    return %c0_i32, %c0_i32_0 : i32, i32
  }
  func.func @transform_4(%arg0: i32) -> (i32, i32) {
    %c0_i32 = arith.constant 0 : i32
    %c0_i32_0 = arith.constant 0 : i32
    %c0_i32_1 = arith.constant 0 : i32
    return %c0_i32, %c0_i32_0 : i32, i32
  }
  func.func @transform_5(%arg0: i32) -> (i32, i32) {
    %c0_i32 = arith.constant 0 : i32
    %c0_i32_0 = arith.constant 0 : i32
    %c0_i32_1 = arith.constant 0 : i32
    return %c0_i32, %c0_i32_0 : i32, i32
  }
  func.func @transform_6(%arg0: i32) -> (i32, i32) {
    %c0_i32 = arith.constant 0 : i32
    %c0_i32_0 = arith.constant 0 : i32
    %c0_i32_1 = arith.constant 0 : i32
    return %c0_i32, %c0_i32_0 : i32, i32
  }
  func.func @transform_7(%arg0: i32) -> (i32, i32) {
    %c0_i32 = arith.constant 0 : i32
    %c0_i32_0 = arith.constant 0 : i32
    %c0_i32_1 = arith.constant 0 : i32
    return %c0_i32, %c0_i32_0 : i32, i32
  }
  func.func @transform_8(%arg0: i32) -> (i32, i32) {
    %c0_i32 = arith.constant 0 : i32
    %c0_i32_0 = arith.constant 0 : i32
    %c0_i32_1 = arith.constant 0 : i32
    return %c0_i32, %c0_i32_0 : i32, i32
  }
  func.func @transform_9(%arg0: i32) -> (i32, i32) {
    %c0_i32 = arith.constant 0 : i32
    %c0_i32_0 = arith.constant 0 : i32
    %c0_i32_1 = arith.constant 0 : i32
    return %c0_i32, %c0_i32_0 : i32, i32
  }
  func.func @transform_10(%arg0: i32) -> (i32, i32) {
    %c0_i32 = arith.constant 0 : i32
    %c0_i32_0 = arith.constant 0 : i32
    %c0_i32_1 = arith.constant 0 : i32
    return %c0_i32, %c0_i32_0 : i32, i32
  }
  func.func @transform_11(%arg0: i32) -> (i32, i32) {
    %c0_i32 = arith.constant 0 : i32
    %c0_i32_0 = arith.constant 0 : i32
    %c0_i32_1 = arith.constant 0 : i32
    return %c0_i32, %c0_i32_0 : i32, i32
  }
  func.func @transform_12(%arg0: i32) -> (i32, i32) {
    %c0_i32 = arith.constant 0 : i32
    %c0_i32_0 = arith.constant 0 : i32
    %c0_i32_1 = arith.constant 0 : i32
    return %c0_i32, %c0_i32_0 : i32, i32
  }
  func.func @transform_13(%arg0: i32) -> (i32, i32) {
    %c0_i32 = arith.constant 0 : i32
    %c0_i32_0 = arith.constant 0 : i32
    return %arg0, %c0_i32 : i32, i32
  }
}

</mosaic_0001>

<llo_original>
// kernel: tpu_custom_call.1
$region0: #{tpu_custom_call.1}
  #allocation0 [shape = 'u32[]', space=smem, size = 0x4, offset = 0x4, fixed_abs, tag = 'smem constant byte address 0x4 - core index']
  #allocation1 [shape = 'u32[144,128]{1,0:T(1,128)}', space=vmem, size = 0x12000, scoped, tag = 'internal scratch']
  %s0 = inlined_call_operand.hbm [shape: f32[8,256], index: 0, kind: input, shape index: {}]
  %s1 = inlined_call_operand.hbm [shape: bf16[256,256], index: 1, kind: input, shape index: {}]
  %s2 = inlined_call_operand.vmem [shape: f32[1,256], index: 2, kind: input, shape index: {}]
  %s3 = inlined_call_operand.hbm [shape: bf16[256,128], index: 3, kind: input, shape index: {}]
  %s4 = inlined_call_operand.vmem [shape: f32[1,128], index: 4, kind: input, shape index: {}]
  %s5 = inlined_call_operand.hbm [shape: bf16[128,128], index: 5, kind: input, shape index: {}]
  %s6 = inlined_call_operand.vmem [shape: f32[1,128], index: 6, kind: input, shape index: {}]
  %s7 = inlined_call_operand.hbm [shape: bf16[128,128], index: 7, kind: input, shape index: {}]
  %s8 = inlined_call_operand.vmem [shape: f32[1,128], index: 8, kind: input, shape index: {}]
  %s9 = inlined_call_operand.hbm [shape: bf16[128,128], index: 9, kind: input, shape index: {}]
  %s10 = inlined_call_operand.vmem [shape: f32[1,128], index: 10, kind: input, shape index: {}]
  %s11 = inlined_call_operand.hbm [shape: bf16[128,128], index: 11, kind: input, shape index: {}]
  %s12 = inlined_call_operand.vmem [shape: f32[1,128], index: 12, kind: input, shape index: {}]
  %s13 = inlined_call_operand.hbm [shape: f32[8,128], index: 13, kind: output, shape index: {}]
  %s14 = sld [smem:[#allocation0]]
  $region90: #{tpu_custom_call.1} parent=0
    _
  %s16 = ssub.s32 1, %s14
  %s17 = scalar_select 0, %s16, %s14
  $region1: #{tpu_custom_call.1} parent=0
    #allocation2 [shape = 'u8[8192]{0}', space=vmem, size = 0x2000, scoped, tag = 'input window, operand 0, single buffered']
    #allocation3 [shape = 's32[1]{0}', space=sflag, size = 0x4, scoped, tag = 'scoped memory for tpu_custom_call.1']
    #allocation4 [shape = 's32[1]{0}', space=sflag, size = 0x4, scoped, tag = 'scoped memory for tpu_custom_call.1']
    #allocation5 [shape = 'u8[131072]{0}', space=vmem, size = 0x20000, scoped, tag = 'input window, operand 1, single buffered']
    #allocation6 [shape = 's32[1]{0}', space=sflag, size = 0x4, scoped, tag = 'scoped memory for tpu_custom_call.1']
    #allocation7 [shape = 'u8[65536]{0}', space=vmem, size = 0x10000, scoped, tag = 'input window, operand 3, single buffered']
    #allocation8 [shape = 'u8[32768]{0}', space=vmem, size = 0x8000, scoped, tag = 'input window, operand 5, single buffered']
    #allocation9 [shape = 's32[1]{0}', space=sflag, size = 0x4, scoped, tag = 'scoped memory for tpu_custom_call.1']
    #allocation10 [shape = 'u8[32768]{0}', space=vmem, size = 0x8000, scoped, tag = 'input window, operand 7, single buffered']
    #allocation11 [shape = 'u8[32768]{0}', space=vmem, size = 0x8000, scoped, tag = 'input window, operand 9, single buffered']
    #allocation12 [shape = 's32[1]{0}', space=sflag, size = 0x4, scoped, tag = 'scoped memory for tpu_custom_call.1']
    #allocation13 [shape = 'u8[32768]{0}', space=vmem, size = 0x8000, scoped, tag = 'input window, operand 11, single buffered']
    #allocation14 [shape = 'u8[4096]{0}', space=vmem, size = 0x1000, scoped, tag = 'output window, operand 0, single buffered']
    %18 = vsyncpa [#allocation3], 0
    %19 = vsyncpa [#allocation6], 0
    %20 = vsyncpa [#allocation9], 0
    %21 = vsyncpa [#allocation12], 0
    %22 = vsyncpa [#allocation4], 0
    // Predicated region
    $region2: #{tpu_custom_call.1} parent=1 // pred_check
      _
    $region3: #{tpu_custom_call.1} parent=1 // pred_check_branch
      %24 = sbr.rel (0) target = $region5
    $region4: #{tpu_custom_call.1} parent=1 // pred_region
      %s26 = ssub.s32 256, 256
      %27 = vsyncadd [#allocation3], %s26
      %s29 = sshll.u32 [#allocation2], 4
      %s30 = int_to_ptr.vmem [resolvable:$true] %s29
      %32 = dma.hbm_to_vmem [thread:$0]  %s0, 256, %s30, [#allocation3]
    $region5: #{tpu_custom_call.1} parent=1 // pred_fallthru
      _
    // Predicated region
    $region6: #{tpu_custom_call.1} parent=1 // pred_check
      _
    $region7: #{tpu_custom_call.1} parent=1 // pred_check_branch
      %34 = sbr.rel (0) target = $region9
    $region8: #{tpu_custom_call.1} parent=1 // pred_region
      %s36 = ssub.s32 4096, 4096
      %37 = vsyncadd [#allocation6], %s36
      %s38 = sshll.u32 [#allocation5], 4
      %s39 = int_to_ptr.vmem [resolvable:$true] %s38
      %44 = dma.hbm_to_vmem [thread:$0]  %s1, 4096, %s39, [#allocation6], 128, 128, 8
    $region9: #{tpu_custom_call.1} parent=1 // pred_fallthru
      _
    // Predicated region
    $region10: #{tpu_custom_call.1} parent=1 // pred_check
      _
    $region11: #{tpu_custom_call.1} parent=1 // pred_check_branch
      %46 = sbr.rel (0) target = $region13
    $region12: #{tpu_custom_call.1} parent=1 // pred_region
      _
    $region13: #{tpu_custom_call.1} parent=1 // pred_fallthru
      _
    // Predicated region
    $region14: #{tpu_custom_call.1} parent=1 // pred_check
      _
    $region15: #{tpu_custom_call.1} parent=1 // pred_check_branch
      %48 = sbr.rel (0) target = $region17
    $region16: #{tpu_custom_call.1} parent=1 // pred_region
      %s50 = ssub.s32 2048, 2048
      %51 = vsyncadd [#allocation6], %s50
      %s52 = sshll.u32 [#allocation7], 4
      %s53 = int_to_ptr.vmem [resolvable:$true] %s52
      %58 = dma.hbm_to_vmem [thread:$0]  %s3, 2048, %s53, [#allocation6], 64, 64, 4
    $region17: #{tpu_custom_call.1} parent=1 // pred_fallthru
      _
    // Predicated region
    $region18: #{tpu_custom_call.1} parent=1 // pred_check
      _
    $region19: #{tpu_custom_call.1} parent=1 // pred_check_branch
      %60 = sbr.rel (0) target = $region21
    $region20: #{tpu_custom_call.1} parent=1 // pred_region
      _
    $region21: #{tpu_custom_call.1} parent=1 // pred_fallthru
      _
    // Predicated region
    $region22: #{tpu_custom_call.1} parent=1 // pred_check
      _
    $region23: #{tpu_custom_call.1} parent=1 // pred_check_branch
      %62 = sbr.rel (0) target = $region25
    $region24: #{tpu_custom_call.1} parent=1 // pred_region
      %s64 = ssub.s32 1024, 1024
      %65 = vsyncadd [#allocation9], %s64
      %s66 = sshll.u32 [#allocation8], 4
      %s67 = int_to_ptr.vmem [resolvable:$true] %s66
      %72 = dma.hbm_to_vmem [thread:$0]  %s5, 1024, %s67, [#allocation9], 64, 64, 4
    $region25: #{tpu_custom_call.1} parent=1 // pred_fallthru
      _
    // Predicated region
    $region26: #{tpu_custom_call.1} parent=1 // pred_check
      _
    $region27: #{tpu_custom_call.1} parent=1 // pred_check_branch
      %74 = sbr.rel (0) target = $region29
    $region28: #{tpu_custom_call.1} parent=1 // pred_region
      _
    $region29: #{tpu_custom_call.1} parent=1 // pred_fallthru
      _
    // Predicated region
    $region30: #{tpu_custom_call.1} parent=1 // pred_check
      _
    $region31: #{tpu_custom_call.1} parent=1 // pred_check_branch
      %76 = sbr.rel (0) target = $region33
    $region32: #{tpu_custom_call.1} parent=1 // pred_region
      %s78 = ssub.s32 1024, 1024
      %79 = vsyncadd [#allocation9], %s78
      %s80 = sshll.u32 [#allocation10], 4
      %s81 = int_to_ptr.vmem [resolvable:$true] %s80
      %86 = dma.hbm_to_vmem [thread:$0]  %s7, 1024, %s81, [#allocation9], 64, 64, 4
    $region33: #{tpu_custom_call.1} parent=1 // pred_fallthru
      _
    // Predicated region
    $region34: #{tpu_custom_call.1} parent=1 // pred_check
      _
    $region35: #{tpu_custom_call.1} parent=1 // pred_check_branch
      %88 = sbr.rel (0) target = $region37
    $region36: #{tpu_custom_call.1} parent=1 // pred_region
      _
    $region37: #{tpu_custom_call.1} parent=1 // pred_fallthru
      _
    // Predicated region
    $region38: #{tpu_custom_call.1} parent=1 // pred_check
      _
    $region39: #{tpu_custom_call.1} parent=1 // pred_check_branch
      %90 = sbr.rel (0) target = $region41
    $region40: #{tpu_custom_call.1} parent=1 // pred_region
      %s92 = ssub.s32 1024, 1024
      %93 = vsyncadd [#allocation12], %s92
      %s94 = sshll.u32 [#allocation11], 4
      %s95 = int_to_ptr.vmem [resolvable:$true] %s94
      %100 = dma.hbm_to_vmem [thread:$0]  %s9, 1024, %s95, [#allocation12], 64, 64, 4
    $region41: #{tpu_custom_call.1} parent=1 // pred_fallthru
      _
    // Predicated region
    $region42: #{tpu_custom_call.1} parent=1 // pred_check
      _
    $region43: #{tpu_custom_call.1} parent=1 // pred_check_branch
      %102 = sbr.rel (0) target = $region45
    $region44: #{tpu_custom_call.1} parent=1 // pred_region
      _
    $region45: #{tpu_custom_call.1} parent=1 // pred_fallthru
      _
    // Predicated region
    $region46: #{tpu_custom_call.1} parent=1 // pred_check
      _
    $region47: #{tpu_custom_call.1} parent=1 // pred_check_branch
      %104 = sbr.rel (0) target = $region49
    $region48: #{tpu_custom_call.1} parent=1 // pred_region
      %s106 = ssub.s32 1024, 1024
      %107 = vsyncadd [#allocation12], %s106
      %s108 = sshll.u32 [#allocation13], 4
      %s109 = int_to_ptr.vmem [resolvable:$true] %s108
      %114 = dma.hbm_to_vmem [thread:$0]  %s11, 1024, %s109, [#allocation12], 64, 64, 4
    $region49: #{tpu_custom_call.1} parent=1 // pred_fallthru
      _
    // Predicated region
    $region50: #{tpu_custom_call.1} parent=1 // pred_check
      _
    $region51: #{tpu_custom_call.1} parent=1 // pred_check_branch
      %116 = sbr.rel (0) target = $region53
    $region52: #{tpu_custom_call.1} parent=1 // pred_region
      _
    $region53: #{tpu_custom_call.1} parent=1 // pred_fallthru
      _
    // Predicated region
    $region54: #{tpu_custom_call.1} parent=1 // pred_check
      _
    $region55: #{tpu_custom_call.1} parent=1 // pred_check_branch
      %118 = sbr.rel (0) target = $region57
    $region56: #{tpu_custom_call.1} parent=1 // pred_region
      %119 = dma.done [#allocation3], 256
    $region57: #{tpu_custom_call.1} parent=1 // pred_fallthru
      _
    // Predicated region
    $region58: #{tpu_custom_call.1} parent=1 // pred_check
      _
    $region59: #{tpu_custom_call.1} parent=1 // pred_check_branch
      %121 = sbr.rel (0) target = $region61
    $region60: #{tpu_custom_call.1} parent=1 // pred_region
      %122 = dma.done [#allocation6], 4096
    $region61: #{tpu_custom_call.1} parent=1 // pred_fallthru
      _
    // Predicated region
    $region62: #{tpu_custom_call.1} parent=1 // pred_check
      _
    $region63: #{tpu_custom_call.1} parent=1 // pred_check_branch
      %124 = sbr.rel (0) target = $region65
    $region64: #{tpu_custom_call.1} parent=1 // pred_region
      %125 = dma.done [#allocation6], 2048
    $region65: #{tpu_custom_call.1} parent=1 // pred_fallthru
      _
    // Predicated region
    $region66: #{tpu_custom_call.1} parent=1 // pred_check
      _
    $region67: #{tpu_custom_call.1} parent=1 // pred_check_branch
      %127 = sbr.rel (0) target = $region69
    $region68: #{tpu_custom_call.1} parent=1 // pred_region
      %128 = dma.done [#allocation9], 1024
    $region69: #{tpu_custom_call.1} parent=1 // pred_fallthru
      _
    // Predicated region
    $region70: #{tpu_custom_call.1} parent=1 // pred_check
      _
    $region71: #{tpu_custom_call.1} parent=1 // pred_check_branch
      %130 = sbr.rel (0) target = $region73
    $region72: #{tpu_custom_call.1} parent=1 // pred_region
      %131 = dma.done [#allocation9], 1024
    $region73: #{tpu_custom_call.1} parent=1 // pred_fallthru
      _
    // Predicated region
    $region74: #{tpu_custom_call.1} parent=1 // pred_check
      _
    $region75: #{tpu_custom_call.1} parent=1 // pred_check_branch
      %133 = sbr.rel (0) target = $region77
    $region76: #{tpu_custom_call.1} parent=1 // pred_region
      %134 = dma.done [#allocation12], 1024
    $region77: #{tpu_custom_call.1} parent=1 // pred_fallthru
      _
    // Predicated region
    $region78: #{tpu_custom_call.1} parent=1 // pred_check
      _
    $region79: #{tpu_custom_call.1} parent=1 // pred_check_branch
      %136 = sbr.rel (0) target = $region81
    $region80: #{tpu_custom_call.1} parent=1 // pred_region
      %137 = dma.done [#allocation12], 1024
    $region81: #{tpu_custom_call.1} parent=1 // pred_fallthru
      _
    %v139 = vld [vmem:[#allocation2] sm:$0xff]
    %v140 = vld [vmem:[#allocation2 + $0x8] sm:$0xff]
    %v141 = vpack.c.bf16 %v139, %v139
    %v142 = vpack.c.bf16 %v140, %v140
    %v143 = vld [vmem:[#allocation5] sm:$0xff]
    %v144 = vld [vmem:[#allocation5 + $0x8] sm:$0xff]
    %v145 = vld [vmem:[#allocation5 + $0x10] sm:$0xff]
    %v146 = vld [vmem:[#allocation5 + $0x18] sm:$0xff]
    %v147 = vld [vmem:[#allocation5 + $0x20] sm:$0xff]
    %v148 = vld [vmem:[#allocation5 + $0x28] sm:$0xff]
    %v149 = vld [vmem:[#allocation5 + $0x30] sm:$0xff]
    %v150 = vld [vmem:[#allocation5 + $0x38] sm:$0xff]
    %v151 = vld [vmem:[#allocation5 + $0x40] sm:$0xff]
    %v152 = vld [vmem:[#allocation5 + $0x48] sm:$0xff]
    %v153 = vld [vmem:[#allocation5 + $0x50] sm:$0xff]
    %v154 = vld [vmem:[#allocation5 + $0x58] sm:$0xff]
    %v155 = vld [vmem:[#allocation5 + $0x60] sm:$0xff]
    %v156 = vld [vmem:[#allocation5 + $0x68] sm:$0xff]
    %v157 = vld [vmem:[#allocation5 + $0x70] sm:$0xff]
    %v158 = vld [vmem:[#allocation5 + $0x78] sm:$0xff]
    %v159 = vld [vmem:[#allocation5 + $0x80] sm:$0xff]
    %v160 = vld [vmem:[#allocation5 + $0x88] sm:$0xff]
    %v161 = vld [vmem:[#allocation5 + $0x90] sm:$0xff]
    %v162 = vld [vmem:[#allocation5 + $0x98] sm:$0xff]
    %v163 = vld [vmem:[#allocation5 + $0xa0] sm:$0xff]
    %v164 = vld [vmem:[#allocation5 + $0xa8] sm:$0xff]
    %v165 = vld [vmem:[#allocation5 + $0xb0] sm:$0xff]
    %v166 = vld [vmem:[#allocation5 + $0xb8] sm:$0xff]
    %v167 = vld [vmem:[#allocation5 + $0xc0] sm:$0xff]
    %v168 = vld [vmem:[#allocation5 + $0xc8] sm:$0xff]
    %v169 = vld [vmem:[#allocation5 + $0xd0] sm:$0xff]
    %v170 = vld [vmem:[#allocation5 + $0xd8] sm:$0xff]
    %v171 = vld [vmem:[#allocation5 + $0xe0] sm:$0xff]
    %v172 = vld [vmem:[#allocation5 + $0xe8] sm:$0xff]
    %v173 = vld [vmem:[#allocation5 + $0xf0] sm:$0xff]
    %v174 = vld [vmem:[#allocation5 + $0xf8] sm:$0xff]
    %v175 = vld [vmem:[%s2] sm:$0x3]
    %v177 = vlaneseq
    %v178 = vshrl.u32 %v177, 7
    %v179 = vsub.s32 0, %v178
    %v180 = vrot.slane %v175, %v179
    %v181 = vlaneseq
    %v182 = vshrl.u32 %v181, 7
    %v183 = vsub.s32 1, %v182
    %v184 = vrot.slane %v175, %v183
    %v219 = vunpack.c.l.b16 %v143
    %v220 = vunpack.c.h.b16 %v143
    %v221 = vunpack.c.l.b16 %v144
    %v222 = vunpack.c.h.b16 %v144
    %v223 = vunpack.c.l.b16 %v145
    %v224 = vunpack.c.h.b16 %v145
    %v225 = vunpack.c.l.b16 %v146
    %v226 = vunpack.c.h.b16 %v146
    %v227 = vunpack.c.l.b16 %v147
    %v228 = vunpack.c.h.b16 %v147
    %v229 = vunpack.c.l.b16 %v148
    %v230 = vunpack.c.h.b16 %v148
    %v231 = vunpack.c.l.b16 %v149
    %v232 = vunpack.c.h.b16 %v149
    %v233 = vunpack.c.l.b16 %v150
    %v234 = vunpack.c.h.b16 %v150
    %v235 = vunpack.c.l.b16 %v151
    %v236 = vunpack.c.h.b16 %v151
    %v237 = vunpack.c.l.b16 %v152
    %v238 = vunpack.c.h.b16 %v152
    %v239 = vunpack.c.l.b16 %v153
    %v240 = vunpack.c.h.b16 %v153
    %v241 = vunpack.c.l.b16 %v154
    %v242 = vunpack.c.h.b16 %v154
    %v243 = vunpack.c.l.b16 %v155
    %v244 = vunpack.c.h.b16 %v155
    %v245 = vunpack.c.l.b16 %v156
    %v246 = vunpack.c.h.b16 %v156
    %v247 = vunpack.c.l.b16 %v157
    %v248 = vunpack.c.h.b16 %v157
    %v249 = vunpack.c.l.b16 %v158
    %v250 = vunpack.c.h.b16 %v158
    %v251 = vunpack.c.l.b16 %v159
    %v252 = vunpack.c.h.b16 %v159
    %v253 = vunpack.c.l.b16 %v160
    %v254 = vunpack.c.h.b16 %v160
    %v255 = vunpack.c.l.b16 %v161
    %v256 = vunpack.c.h.b16 %v161
    %v257 = vunpack.c.l.b16 %v162
    %v258 = vunpack.c.h.b16 %v162
    %v259 = vunpack.c.l.b16 %v163
    %v260 = vunpack.c.h.b16 %v163
    %v261 = vunpack.c.l.b16 %v164
    %v262 = vunpack.c.h.b16 %v164
    %v263 = vunpack.c.l.b16 %v165
    %v264 = vunpack.c.h.b16 %v165
    %v265 = vunpack.c.l.b16 %v166
    %v266 = vunpack.c.h.b16 %v166
    %v267 = vunpack.c.l.b16 %v167
    %v268 = vunpack.c.h.b16 %v167
    %v269 = vunpack.c.l.b16 %v168
    %v270 = vunpack.c.h.b16 %v168
    %v271 = vunpack.c.l.b16 %v169
    %v272 = vunpack.c.h.b16 %v169
    %v273 = vunpack.c.l.b16 %v170
    %v274 = vunpack.c.h.b16 %v170
    %v275 = vunpack.c.l.b16 %v171
    %v276 = vunpack.c.h.b16 %v171
    %v277 = vunpack.c.l.b16 %v172
    %v278 = vunpack.c.h.b16 %v172
    %v279 = vunpack.c.l.b16 %v173
    %v280 = vunpack.c.h.b16 %v173
    %v281 = vunpack.c.l.b16 %v174
    %v282 = vunpack.c.h.b16 %v174
    %v283 = vpack.c.b16 %v221, %v219
    %v284 = vpack.c.b16 %v222, %v220
    %v285 = vpack.c.b16 %v225, %v223
    %v286 = vpack.c.b16 %v226, %v224
    %v287 = vpack.c.b16 %v229, %v227
    %v288 = vpack.c.b16 %v230, %v228
    %v289 = vpack.c.b16 %v233, %v231
    %v290 = vpack.c.b16 %v234, %v232
    %v291 = vpack.c.b16 %v237, %v235
    %v292 = vpack.c.b16 %v238, %v236
    %v293 = vpack.c.b16 %v241, %v239
    %v294 = vpack.c.b16 %v242, %v240
    %v295 = vpack.c.b16 %v245, %v243
    %v296 = vpack.c.b16 %v246, %v244
    %v297 = vpack.c.b16 %v249, %v247
    %v298 = vpack.c.b16 %v250, %v248
    %v299 = vpack.c.b16 %v253, %v251
    %v300 = vpack.c.b16 %v254, %v252
    %v301 = vpack.c.b16 %v257, %v255
    %v302 = vpack.c.b16 %v258, %v256
    %v303 = vpack.c.b16 %v261, %v259
    %v304 = vpack.c.b16 %v262, %v260
    %v305 = vpack.c.b16 %v265, %v263
    %v306 = vpack.c.b16 %v266, %v264
    %v307 = vpack.c.b16 %v269, %v267
    %v308 = vpack.c.b16 %v270, %v268
    %v309 = vpack.c.b16 %v273, %v271
    %v310 = vpack.c.b16 %v274, %v272
    %v311 = vpack.c.b16 %v277, %v275
    %v312 = vpack.c.b16 %v278, %v276
    %v313 = vpack.c.b16 %v281, %v279
    %v314 = vpack.c.b16 %v282, %v280
    %347 = vmatprep.subr.bf16.mxu0 %v284
    %348 = vmatpush1.bf16.msra.mxu0 %v283
    %349 = vmatprep.subr.bf16.mxu0 %v286
    %350 = vmatpush1.bf16.msra.mxu0 %v285
    %351 = vmatprep.subr.bf16.mxu0 %v288
    %352 = vmatpush1.bf16.msra.mxu0 %v287
    %353 = vmatprep.subr.bf16.mxu0 %v290
    %354 = vmatpush1.bf16.msra.mxu0 %v289
    %355 = vmatprep.subr.bf16.mxu0 %v292
    %356 = vmatpush1.bf16.msra.mxu0 %v291
    %357 = vmatprep.subr.bf16.mxu0 %v294
    %358 = vmatpush1.bf16.msra.mxu0 %v293
    %359 = vmatprep.subr.bf16.mxu0 %v296
    %360 = vmatpush1.bf16.msra.mxu0 %v295
    %361 = vmatprep.subr.bf16.mxu0 %v298
    %362 = vmatpush1.bf16.msra.mxu0 %v297
    %363 = vmatprep.subr.bf16.mxu0 %v300
    %364 = vmatpush1.bf16.msra.mxu0 %v299
    %365 = vmatprep.subr.bf16.mxu0 %v302
    %366 = vmatpush1.bf16.msra.mxu0 %v301
    %367 = vmatprep.subr.bf16.mxu0 %v304
    %368 = vmatpush1.bf16.msra.mxu0 %v303
    %369 = vmatprep.subr.bf16.mxu0 %v306
    %370 = vmatpush1.bf16.msra.mxu0 %v305
    %371 = vmatprep.subr.bf16.mxu0 %v308
    %372 = vmatpush1.bf16.msra.mxu0 %v307
    %373 = vmatprep.subr.bf16.mxu0 %v310
    %374 = vmatpush1.bf16.msra.mxu0 %v309
    %375 = vmatprep.subr.bf16.mxu0 %v312
    %376 = vmatpush1.bf16.msra.mxu0 %v311
    %377 = vmatprep.subr.bf16.mxu0 %v314
    %378 = vmatpush1.bf16.msra.mxu0 %v313
    %379 = vmatprep.mubr.bf16.mxu0 %v142
    %380 = vmatmul.mubr.bf16.gmra.mrb[0].mxu0 %v141
    %v381 = vpop.f32.mrb[0].mxu0
    %v382 = vadd.f32 %v180, %v381
    %v383 = vpop.f32.mrb[0].mxu0
    %v384 = vadd.f32 %v184, %v383
    %v385 = vpop.f32.mrb[0].mxu0
    %v386 = vpop.f32.mrb[0].mxu0
    %387 = vdwg.mxu0
    %v388 = vmul.f32 %v382, 0.2
    %v389 = vmul.f32 %v384, 0.2
    %v390 = vmax.f32 %v382, %v388
    %v391 = vmax.f32 %v384, %v389
    %v392 = vpack.c.bf16 %v390, %v390
    %v393 = vpack.c.bf16 %v391, %v391
    %v394 = vld [vmem:[#allocation7] sm:$0xf]
    %v395 = vld [vmem:[#allocation7 + $0x4] sm:$0xf]
    %v396 = vld [vmem:[#allocation7 + $0x8] sm:$0xf]
    %v397 = vld [vmem:[#allocation7 + $0xc] sm:$0xf]
    %v398 = vld [vmem:[#allocation7 + $0x10] sm:$0xf]
    %v399 = vld [vmem:[#allocation7 + $0x14] sm:$0xf]
    %v400 = vld [vmem:[#allocation7 + $0x18] sm:$0xf]
    %v401 = vld [vmem:[#allocation7 + $0x1c] sm:$0xf]
    %v402 = vld [vmem:[#allocation7 + $0x20] sm:$0xf]
    %v403 = vld [vmem:[#allocation7 + $0x24] sm:$0xf]
    %v404 = vld [vmem:[#allocation7 + $0x28] sm:$0xf]
    %v405 = vld [vmem:[#allocation7 + $0x2c] sm:$0xf]
    %v406 = vld [vmem:[#allocation7 + $0x30] sm:$0xf]
    %v407 = vld [vmem:[#allocation7 + $0x34] sm:$0xf]
    %v408 = vld [vmem:[#allocation7 + $0x38] sm:$0xf]
    %v409 = vld [vmem:[#allocation7 + $0x3c] sm:$0xf]
    %v410 = vld [vmem:[#allocation7 + $0x40] sm:$0xf]
    %v411 = vld [vmem:[#allocation7 + $0x44] sm:$0xf]
    %v412 = vld [vmem:[#allocation7 + $0x48] sm:$0xf]
    %v413 = vld [vmem:[#allocation7 + $0x4c] sm:$0xf]
    %v414 = vld [vmem:[#allocation7 + $0x50] sm:$0xf]
    %v415 = vld [vmem:[#allocation7 + $0x54] sm:$0xf]
    %v416 = vld [vmem:[#allocation7 + $0x58] sm:$0xf]
    %v417 = vld [vmem:[#allocation7 + $0x5c] sm:$0xf]
    %v418 = vld [vmem:[#allocation7 + $0x60] sm:$0xf]
    %v419 = vld [vmem:[#allocation7 + $0x64] sm:$0xf]
    %v420 = vld [vmem:[#allocation7 + $0x68] sm:$0xf]
    %v421 = vld [vmem:[#allocation7 + $0x6c] sm:$0xf]
    %v422 = vld [vmem:[#allocation7 + $0x70] sm:$0xf]
    %v423 = vld [vmem:[#allocation7 + $0x74] sm:$0xf]
    %v424 = vld [vmem:[#allocation7 + $0x78] sm:$0xf]
    %v425 = vld [vmem:[#allocation7 + $0x7c] sm:$0xf]
    %v426 = vld [vmem:[%s4] sm:$0x1]
    %v428 = vlaneseq
    %v429 = vshrl.u32 %v428, 7
    %v430 = vsub.s32 0, %v429
    %v431 = vrot.slane %v426, %v430
    %v465 = vunpack.c.l.b16 %v394
    %v466 = vunpack.c.l.b16 %v395
    %v467 = vunpack.c.l.b16 %v396
    %v468 = vunpack.c.l.b16 %v397
    %v469 = vunpack.c.l.b16 %v398
    %v470 = vunpack.c.l.b16 %v399
    %v471 = vunpack.c.l.b16 %v400
    %v472 = vunpack.c.l.b16 %v401
    %v473 = vunpack.c.l.b16 %v402
    %v474 = vunpack.c.l.b16 %v403
    %v475 = vunpack.c.l.b16 %v404
    %v476 = vunpack.c.l.b16 %v405
    %v477 = vunpack.c.l.b16 %v406
    %v478 = vunpack.c.l.b16 %v407
    %v479 = vunpack.c.l.b16 %v408
    %v480 = vunpack.c.l.b16 %v409
    %v481 = vunpack.c.l.b16 %v410
    %v482 = vunpack.c.l.b16 %v411
    %v483 = vunpack.c.l.b16 %v412
    %v484 = vunpack.c.l.b16 %v413
    %v485 = vunpack.c.l.b16 %v414
    %v486 = vunpack.c.l.b16 %v415
    %v487 = vunpack.c.l.b16 %v416
    %v488 = vunpack.c.l.b16 %v417
    %v489 = vunpack.c.l.b16 %v418
    %v490 = vunpack.c.l.b16 %v419
    %v491 = vunpack.c.l.b16 %v420
    %v492 = vunpack.c.l.b16 %v421
    %v493 = vunpack.c.l.b16 %v422
    %v494 = vunpack.c.l.b16 %v423
    %v495 = vunpack.c.l.b16 %v424
    %v496 = vunpack.c.l.b16 %v425
    %v497 = vpack.c.b16 %v466, %v465
    %v498 = vpack.c.b16 %v468, %v467
    %v499 = vpack.c.b16 %v470, %v469
    %v500 = vpack.c.b16 %v472, %v471
    %v501 = vpack.c.b16 %v474, %v473
    %v502 = vpack.c.b16 %v476, %v475
    %v503 = vpack.c.b16 %v478, %v477
    %v504 = vpack.c.b16 %v480, %v479
    %v505 = vpack.c.b16 %v482, %v481
    %v506 = vpack.c.b16 %v484, %v483
    %v507 = vpack.c.b16 %v486, %v485
    %v508 = vpack.c.b16 %v488, %v487
    %v509 = vpack.c.b16 %v490, %v489
    %v510 = vpack.c.b16 %v492, %v491
    %v511 = vpack.c.b16 %v494, %v493
    %v512 = vpack.c.b16 %v496, %v495
    %529 = vmatprep.subr.bf16.mxu0 0
    %530 = vmatpush1.bf16.msra.mxu0 %v497
    %531 = vmatprep.subr.bf16.mxu0 0
    %532 = vmatpush1.bf16.msra.mxu0 %v498
    %533 = vmatprep.subr.bf16.mxu0 0
    %534 = vmatpush1.bf16.msra.mxu0 %v499
    %535 = vmatprep.subr.bf16.mxu0 0
    %536 = vmatpush1.bf16.msra.mxu0 %v500
    %537 = vmatprep.subr.bf16.mxu0 0
    %538 = vmatpush1.bf16.msra.mxu0 %v501
    %539 = vmatprep.subr.bf16.mxu0 0
    %540 = vmatpush1.bf16.msra.mxu0 %v502
    %541 = vmatprep.subr.bf16.mxu0 0
    %542 = vmatpush1.bf16.msra.mxu0 %v503
    %543 = vmatprep.subr.bf16.mxu0 0
    %544 = vmatpush1.bf16.msra.mxu0 %v504
    %545 = vmatprep.subr.bf16.mxu0 0
    %546 = vmatpush1.bf16.msra.mxu0 %v505
    %547 = vmatprep.subr.bf16.mxu0 0
    %548 = vmatpush1.bf16.msra.mxu0 %v506
    %549 = vmatprep.subr.bf16.mxu0 0
    %550 = vmatpush1.bf16.msra.mxu0 %v507
    %551 = vmatprep.subr.bf16.mxu0 0
    %552 = vmatpush1.bf16.msra.mxu0 %v508
    %553 = vmatprep.subr.bf16.mxu0 0
    %554 = vmatpush1.bf16.msra.mxu0 %v509
    %555 = vmatprep.subr.bf16.mxu0 0
    %556 = vmatpush1.bf16.msra.mxu0 %v510
    %557 = vmatprep.subr.bf16.mxu0 0
    %558 = vmatpush1.bf16.msra.mxu0 %v511
    %559 = vmatprep.subr.bf16.mxu0 0
    %560 = vmatpush1.bf16.msra.mxu0 %v512
    %561 = vmatprep.mubr.bf16.mxu0 %v393
    %562 = vmatmul.mubr.bf16.gmra.mrb[0].mxu0 %v392
    %v563 = vpop.f32.mrb[0].mxu0
    %v564 = vadd.f32 %v431, %v563
    %v565 = vpop.f32.mrb[0].mxu0
    %v566 = vpop.f32.mrb[0].mxu0
    %v567 = vpop.f32.mrb[0].mxu0
    %568 = vdwg.mxu0
    %v569 = vmul.f32 %v564, 0.2
    %v570 = vmax.f32 %v564, %v569
    %v571 = vpack.c.bf16 %v570, %v570
    %v572 = vld [vmem:[#allocation8] sm:$0xf]
    %v573 = vld [vmem:[#allocation8 + $0x4] sm:$0xf]
    %v574 = vld [vmem:[#allocation8 + $0x8] sm:$0xf]
    %v575 = vld [vmem:[#allocation8 + $0xc] sm:$0xf]
    %v576 = vld [vmem:[#allocation8 + $0x10] sm:$0xf]
    %v577 = vld [vmem:[#allocation8 + $0x14] sm:$0xf]
    %v578 = vld [vmem:[#allocation8 + $0x18] sm:$0xf]
    %v579 = vld [vmem:[#allocation8 + $0x1c] sm:$0xf]
    %v580 = vld [vmem:[#allocation8 + $0x20] sm:$0xf]
    %v581 = vld [vmem:[#allocation8 + $0x24] sm:$0xf]
    %v582 = vld [vmem:[#allocation8 + $0x28] sm:$0xf]
    %v583 = vld [vmem:[#allocation8 + $0x2c] sm:$0xf]
    %v584 = vld [vmem:[#allocation8 + $0x30] sm:$0xf]
    %v585 = vld [vmem:[#allocation8 + $0x34] sm:$0xf]
    %v586 = vld [vmem:[#allocation8 + $0x38] sm:$0xf]
    %v587 = vld [vmem:[#allocation8 + $0x3c] sm:$0xf]
    %v588 = vld [vmem:[%s6] sm:$0x1]
    %v590 = vlaneseq
    %v591 = vshrl.u32 %v590, 7
    %v592 = vsub.s32 0, %v591
    %v593 = vrot.slane %v588, %v592
    %v611 = vunpack.c.l.b16 %v572
    %v612 = vunpack.c.l.b16 %v573
    %v613 = vunpack.c.l.b16 %v574
    %v614 = vunpack.c.l.b16 %v575
    %v615 = vunpack.c.l.b16 %v576
    %v616 = vunpack.c.l.b16 %v577
    %v617 = vunpack.c.l.b16 %v578
    %v618 = vunpack.c.l.b16 %v579
    %v619 = vunpack.c.l.b16 %v580
    %v620 = vunpack.c.l.b16 %v581
    %v621 = vunpack.c.l.b16 %v582
    %v622 = vunpack.c.l.b16 %v583
    %v623 = vunpack.c.l.b16 %v584
    %v624 = vunpack.c.l.b16 %v585
    %v625 = vunpack.c.l.b16 %v586
    %v626 = vunpack.c.l.b16 %v587
    %v627 = vpack.c.b16 %v612, %v611
    %v628 = vpack.c.b16 %v614, %v613
    %v629 = vpack.c.b16 %v616, %v615
    %v630 = vpack.c.b16 %v618, %v617
    %v631 = vpack.c.b16 %v620, %v619
    %v632 = vpack.c.b16 %v622, %v621
    %v633 = vpack.c.b16 %v624, %v623
    %v634 = vpack.c.b16 %v626, %v625
    %643 = vmatprep.subr.bf16.mxu0 0
    %644 = vmatpush1.bf16.msra.mxu0 %v627
    %645 = vmatprep.subr.bf16.mxu0 0
    %646 = vmatpush1.bf16.msra.mxu0 %v628
    %647 = vmatprep.subr.bf16.mxu0 0
    %648 = vmatpush1.bf16.msra.mxu0 %v629
    %649 = vmatprep.subr.bf16.mxu0 0
    %650 = vmatpush1.bf16.msra.mxu0 %v630
    %651 = vmatprep.subr.bf16.mxu0 0
    %652 = vmatpush1.bf16.msra.mxu0 %v631
    %653 = vmatprep.subr.bf16.mxu0 0
    %654 = vmatpush1.bf16.msra.mxu0 %v632
    %655 = vmatprep.subr.bf16.mxu0 0
    %656 = vmatpush1.bf16.msra.mxu0 %v633
    %657 = vmatprep.subr.bf16.mxu0 0
    %658 = vmatpush1.bf16.msra.mxu0 %v634
    %659 = vmatprep.subr.bf16.mxu0 0
    %660 = vmatpush1.bf16.msra.mxu0 0
    %661 = vmatprep.subr.bf16.mxu0 0
    %662 = vmatpush1.bf16.msra.mxu0 0
    %663 = vmatprep.subr.bf16.mxu0 0
    %664 = vmatpush1.bf16.msra.mxu0 0
    %665 = vmatprep.subr.bf16.mxu0 0
    %666 = vmatpush1.bf16.msra.mxu0 0
    %667 = vmatprep.subr.bf16.mxu0 0
    %668 = vmatpush1.bf16.msra.mxu0 0
    %669 = vmatprep.subr.bf16.mxu0 0
    %670 = vmatpush1.bf16.msra.mxu0 0
    %671 = vmatprep.subr.bf16.mxu0 0
    %672 = vmatpush1.bf16.msra.mxu0 0
    %673 = vmatprep.subr.bf16.mxu0 0
    %674 = vmatpush1.bf16.msra.mxu0 0
    %675 = vmatprep.mubr.bf16.mxu0 0
    %676 = vmatmul.mubr.bf16.gmra.mrb[0].mxu0 %v571
    %v677 = vpop.f32.mrb[0].mxu0
    %v678 = vadd.f32 %v593, %v677
    %v679 = vpop.f32.mrb[0].mxu0
    %v680 = vpop.f32.mrb[0].mxu0
    %v681 = vpop.f32.mrb[0].mxu0
    %682 = vdwg.mxu0
    %v683 = vmax.f32 %v678, 0.0
    %v684 = vpack.c.bf16 %v683, %v683
    %v685 = vld [vmem:[#allocation10] sm:$0xf]
    %v686 = vld [vmem:[#allocation10 + $0x4] sm:$0xf]
    %v687 = vld [vmem:[#allocation10 + $0x8] sm:$0xf]
    %v688 = vld [vmem:[#allocation10 + $0xc] sm:$0xf]
    %v689 = vld [vmem:[#allocation10 + $0x10] sm:$0xf]
    %v690 = vld [vmem:[#allocation10 + $0x14] sm:$0xf]
    %v691 = vld [vmem:[#allocation10 + $0x18] sm:$0xf]
    %v692 = vld [vmem:[#allocation10 + $0x1c] sm:$0xf]
    %v693 = vld [vmem:[#allocation10 + $0x20] sm:$0xf]
    %v694 = vld [vmem:[#allocation10 + $0x24] sm:$0xf]
    %v695 = vld [vmem:[#allocation10 + $0x28] sm:$0xf]
    %v696 = vld [vmem:[#allocation10 + $0x2c] sm:$0xf]
    %v697 = vld [vmem:[#allocation10 + $0x30] sm:$0xf]
    %v698 = vld [vmem:[#allocation10 + $0x34] sm:$0xf]
    %v699 = vld [vmem:[#allocation10 + $0x38] sm:$0xf]
    %v700 = vld [vmem:[#allocation10 + $0x3c] sm:$0xf]
    %v701 = vld [vmem:[%s8] sm:$0x1]
    %v703 = vlaneseq
    %v704 = vshrl.u32 %v703, 7
    %v705 = vsub.s32 0, %v704
    %v706 = vrot.slane %v701, %v705
    %v724 = vunpack.c.l.b16 %v685
    %v725 = vunpack.c.l.b16 %v686
    %v726 = vunpack.c.l.b16 %v687
    %v727 = vunpack.c.l.b16 %v688
    %v728 = vunpack.c.l.b16 %v689
    %v729 = vunpack.c.l.b16 %v690
    %v730 = vunpack.c.l.b16 %v691
    %v731 = vunpack.c.l.b16 %v692
    %v732 = vunpack.c.l.b16 %v693
    %v733 = vunpack.c.l.b16 %v694
    %v734 = vunpack.c.l.b16 %v695
    %v735 = vunpack.c.l.b16 %v696
    %v736 = vunpack.c.l.b16 %v697
    %v737 = vunpack.c.l.b16 %v698
    %v738 = vunpack.c.l.b16 %v699
    %v739 = vunpack.c.l.b16 %v700
    %v740 = vpack.c.b16 %v725, %v724
    %v741 = vpack.c.b16 %v727, %v726
    %v742 = vpack.c.b16 %v729, %v728
    %v743 = vpack.c.b16 %v731, %v730
    %v744 = vpack.c.b16 %v733, %v732
    %v745 = vpack.c.b16 %v735, %v734
    %v746 = vpack.c.b16 %v737, %v736
    %v747 = vpack.c.b16 %v739, %v738
    %756 = vmatprep.subr.bf16.mxu0 0
    %757 = vmatpush1.bf16.msra.mxu0 %v740
    %758 = vmatprep.subr.bf16.mxu0 0
    %759 = vmatpush1.bf16.msra.mxu0 %v741
    %760 = vmatprep.subr.bf16.mxu0 0
    %761 = vmatpush1.bf16.msra.mxu0 %v742
    %762 = vmatprep.subr.bf16.mxu0 0
    %763 = vmatpush1.bf16.msra.mxu0 %v743
    %764 = vmatprep.subr.bf16.mxu0 0
    %765 = vmatpush1.bf16.msra.mxu0 %v744
    %766 = vmatprep.subr.bf16.mxu0 0
    %767 = vmatpush1.bf16.msra.mxu0 %v745
    %768 = vmatprep.subr.bf16.mxu0 0
    %769 = vmatpush1.bf16.msra.mxu0 %v746
    %770 = vmatprep.subr.bf16.mxu0 0
    %771 = vmatpush1.bf16.msra.mxu0 %v747
    %772 = vmatprep.subr.bf16.mxu0 0
    %773 = vmatpush1.bf16.msra.mxu0 0
    %774 = vmatprep.subr.bf16.mxu0 0
    %775 = vmatpush1.bf16.msra.mxu0 0
    %776 = vmatprep.subr.bf16.mxu0 0
    %777 = vmatpush1.bf16.msra.mxu0 0
    %778 = vmatprep.subr.bf16.mxu0 0
    %779 = vmatpush1.bf16.msra.mxu0 0
    %780 = vmatprep.subr.bf16.mxu0 0
    %781 = vmatpush1.bf16.msra.mxu0 0
    %782 = vmatprep.subr.bf16.mxu0 0
    %783 = vmatpush1.bf16.msra.mxu0 0
    %784 = vmatprep.subr.bf16.mxu0 0
    %785 = vmatpush1.bf16.msra.mxu0 0
    %786 = vmatprep.subr.bf16.mxu0 0
    %787 = vmatpush1.bf16.msra.mxu0 0
    %788 = vmatprep.mubr.bf16.mxu0 0
    %789 = vmatmul.mubr.bf16.gmra.mrb[0].mxu0 %v684
    %v790 = vpop.f32.mrb[0].mxu0
    %v791 = vadd.f32 %v706, %v790
    %v792 = vpop.f32.mrb[0].mxu0
    %v793 = vpop.f32.mrb[0].mxu0
    %v794 = vpop.f32.mrb[0].mxu0
    %795 = vdwg.mxu0
    %v796 = vsub.f32 0.0, %v791
    %v797 = vmul.f32 %v796, 1.442695
    %v798 = vpow.pop %v797
    %v799 = vadd.f32 %v798, 1.0
    %v800 = vrcp.pop %v799
    %v801 = vmul.f32 1.0, %v800
    %v802 = vsub.f32 0.0, %v801
    %v803 = vmul.f32 %v802, 1.442695
    %v804 = vpow.pop %v803
    %v805 = vadd.f32 %v804, 1.0
    %v806 = vrcp.pop %v805
    %v807 = vmul.f32 1.0, %v806
    %v808 = vmul.f32 %v570, %v807
    %v809 = vpack.c.bf16 %v808, %v808
    %v810 = vld [vmem:[#allocation11] sm:$0xf]
    %v811 = vld [vmem:[#allocation11 + $0x4] sm:$0xf]
    %v812 = vld [vmem:[#allocation11 + $0x8] sm:$0xf]
    %v813 = vld [vmem:[#allocation11 + $0xc] sm:$0xf]
    %v814 = vld [vmem:[#allocation11 + $0x10] sm:$0xf]
    %v815 = vld [vmem:[#allocation11 + $0x14] sm:$0xf]
    %v816 = vld [vmem:[#allocation11 + $0x18] sm:$0xf]
    %v817 = vld [vmem:[#allocation11 + $0x1c] sm:$0xf]
    %v818 = vld [vmem:[#allocation11 + $0x20] sm:$0xf]
    %v819 = vld [vmem:[#allocation11 + $0x24] sm:$0xf]
    %v820 = vld [vmem:[#allocation11 + $0x28] sm:$0xf]
    %v821 = vld [vmem:[#allocation11 + $0x2c] sm:$0xf]
    %v822 = vld [vmem:[#allocation11 + $0x30] sm:$0xf]
    %v823 = vld [vmem:[#allocation11 + $0x34] sm:$0xf]
    %v824 = vld [vmem:[#allocation11 + $0x38] sm:$0xf]
    %v825 = vld [vmem:[#allocation11 + $0x3c] sm:$0xf]
    %v826 = vld [vmem:[%s10] sm:$0x1]
    %v828 = vlaneseq
    %v829 = vshrl.u32 %v828, 7
    %v830 = vsub.s32 0, %v829
    %v831 = vrot.slane %v826, %v830
    %v849 = vunpack.c.l.b16 %v810
    %v850 = vunpack.c.l.b16 %v811
    %v851 = vunpack.c.l.b16 %v812
    %v852 = vunpack.c.l.b16 %v813
    %v853 = vunpack.c.l.b16 %v814
    %v854 = vunpack.c.l.b16 %v815
    %v855 = vunpack.c.l.b16 %v816
    %v856 = vunpack.c.l.b16 %v817
    %v857 = vunpack.c.l.b16 %v818
    %v858 = vunpack.c.l.b16 %v819
    %v859 = vunpack.c.l.b16 %v820
    %v860 = vunpack.c.l.b16 %v821
    %v861 = vunpack.c.l.b16 %v822
    %v862 = vunpack.c.l.b16 %v823
    %v863 = vunpack.c.l.b16 %v824
    %v864 = vunpack.c.l.b16 %v825
    %v865 = vpack.c.b16 %v850, %v849
    %v866 = vpack.c.b16 %v852, %v851
    %v867 = vpack.c.b16 %v854, %v853
    %v868 = vpack.c.b16 %v856, %v855
    %v869 = vpack.c.b16 %v858, %v857
    %v870 = vpack.c.b16 %v860, %v859
    %v871 = vpack.c.b16 %v862, %v861
    %v872 = vpack.c.b16 %v864, %v863
    %881 = vmatprep.subr.bf16.mxu0 0
    %882 = vmatpush1.bf16.msra.mxu0 %v865
    %883 = vmatprep.subr.bf16.mxu0 0
    %884 = vmatpush1.bf16.msra.mxu0 %v866
    %885 = vmatprep.subr.bf16.mxu0 0
    %886 = vmatpush1.bf16.msra.mxu0 %v867
    %887 = vmatprep.subr.bf16.mxu0 0
    %888 = vmatpush1.bf16.msra.mxu0 %v868
    %889 = vmatprep.subr.bf16.mxu0 0
    %890 = vmatpush1.bf16.msra.mxu0 %v869
    %891 = vmatprep.subr.bf16.mxu0 0
    %892 = vmatpush1.bf16.msra.mxu0 %v870
    %893 = vmatprep.subr.bf16.mxu0 0
    %894 = vmatpush1.bf16.msra.mxu0 %v871
    %895 = vmatprep.subr.bf16.mxu0 0
    %896 = vmatpush1.bf16.msra.mxu0 %v872
    %897 = vmatprep.subr.bf16.mxu0 0
    %898 = vmatpush1.bf16.msra.mxu0 0
    %899 = vmatprep.subr.bf16.mxu0 0
    %900 = vmatpush1.bf16.msra.mxu0 0
    %901 = vmatprep.subr.bf16.mxu0 0
    %902 = vmatpush1.bf16.msra.mxu0 0
    %903 = vmatprep.subr.bf16.mxu0 0
    %904 = vmatpush1.bf16.msra.mxu0 0
    %905 = vmatprep.subr.bf16.mxu0 0
    %906 = vmatpush1.bf16.msra.mxu0 0
    %907 = vmatprep.subr.bf16.mxu0 0
    %908 = vmatpush1.bf16.msra.mxu0 0
    %909 = vmatprep.subr.bf16.mxu0 0
    %910 = vmatpush1.bf16.msra.mxu0 0
    %911 = vmatprep.subr.bf16.mxu0 0
    %912 = vmatpush1.bf16.msra.mxu0 0
    %913 = vmatprep.mubr.bf16.mxu0 0
    %914 = vmatmul.mubr.bf16.gmra.mrb[0].mxu0 %v809
    %v915 = vpop.f32.mrb[0].mxu0
    %v916 = vadd.f32 %v831, %v915
    %v917 = vpop.f32.mrb[0].mxu0
    %v918 = vpop.f32.mrb[0].mxu0
    %v919 = vpop.f32.mrb[0].mxu0
    %920 = vdwg.mxu0
    %v921 = vmul.f32 %v916, 0.2
    %v922 = vmax.f32 %v916, %v921
    %v923 = vpack.c.bf16 %v922, %v922
    %v924 = vld [vmem:[#allocation13] sm:$0xf]
    %v925 = vld [vmem:[#allocation13 + $0x4] sm:$0xf]
    %v926 = vld [vmem:[#allocation13 + $0x8] sm:$0xf]
    %v927 = vld [vmem:[#allocation13 + $0xc] sm:$0xf]
    %v928 = vld [vmem:[#allocation13 + $0x10] sm:$0xf]
    %v929 = vld [vmem:[#allocation13 + $0x14] sm:$0xf]
    %v930 = vld [vmem:[#allocation13 + $0x18] sm:$0xf]
    %v931 = vld [vmem:[#allocation13 + $0x1c] sm:$0xf]
    %v932 = vld [vmem:[#allocation13 + $0x20] sm:$0xf]
    %v933 = vld [vmem:[#allocation13 + $0x24] sm:$0xf]
    %v934 = vld [vmem:[#allocation13 + $0x28] sm:$0xf]
    %v935 = vld [vmem:[#allocation13 + $0x2c] sm:$0xf]
    %v936 = vld [vmem:[#allocation13 + $0x30] sm:$0xf]
    %v937 = vld [vmem:[#allocation13 + $0x34] sm:$0xf]
    %v938 = vld [vmem:[#allocation13 + $0x38] sm:$0xf]
    %v939 = vld [vmem:[#allocation13 + $0x3c] sm:$0xf]
    %v940 = vld [vmem:[%s12] sm:$0x1]
    %v942 = vlaneseq
    %v943 = vshrl.u32 %v942, 7
    %v944 = vsub.s32 0, %v943
    %v945 = vrot.slane %v940, %v944
    %v963 = vunpack.c.l.b16 %v924
    %v964 = vunpack.c.l.b16 %v925
    %v965 = vunpack.c.l.b16 %v926
    %v966 = vunpack.c.l.b16 %v927
    %v967 = vunpack.c.l.b16 %v928
    %v968 = vunpack.c.l.b16 %v929
    %v969 = vunpack.c.l.b16 %v930
    %v970 = vunpack.c.l.b16 %v931
    %v971 = vunpack.c.l.b16 %v932
    %v972 = vunpack.c.l.b16 %v933
    %v973 = vunpack.c.l.b16 %v934
    %v974 = vunpack.c.l.b16 %v935
    %v975 = vunpack.c.l.b16 %v936
    %v976 = vunpack.c.l.b16 %v937
    %v977 = vunpack.c.l.b16 %v938
    %v978 = vunpack.c.l.b16 %v939
    %v979 = vpack.c.b16 %v964, %v963
    %v980 = vpack.c.b16 %v966, %v965
    %v981 = vpack.c.b16 %v968, %v967
    %v982 = vpack.c.b16 %v970, %v969
    %v983 = vpack.c.b16 %v972, %v971
    %v984 = vpack.c.b16 %v974, %v973
    %v985 = vpack.c.b16 %v976, %v975
    %v986 = vpack.c.b16 %v978, %v977
    %995 = vmatprep.subr.bf16.mxu0 0
    %996 = vmatpush1.bf16.msra.mxu0 %v979
    %997 = vmatprep.subr.bf16.mxu0 0
    %998 = vmatpush1.bf16.msra.mxu0 %v980
    %999 = vmatprep.subr.bf16.mxu0 0
    %1000 = vmatpush1.bf16.msra.mxu0 %v981
    %1001 = vmatprep.subr.bf16.mxu0 0
    %1002 = vmatpush1.bf16.msra.mxu0 %v982
    %1003 = vmatprep.subr.bf16.mxu0 0
    %1004 = vmatpush1.bf16.msra.mxu0 %v983
    %1005 = vmatprep.subr.bf16.mxu0 0
    %1006 = vmatpush1.bf16.msra.mxu0 %v984
    %1007 = vmatprep.subr.bf16.mxu0 0
    %1008 = vmatpush1.bf16.msra.mxu0 %v985
    %1009 = vmatprep.subr.bf16.mxu0 0
    %1010 = vmatpush1.bf16.msra.mxu0 %v986
    %1011 = vmatprep.subr.bf16.mxu0 0
    %1012 = vmatpush1.bf16.msra.mxu0 0
    %1013 = vmatprep.subr.bf16.mxu0 0
    %1014 = vmatpush1.bf16.msra.mxu0 0
    %1015 = vmatprep.subr.bf16.mxu0 0
    %1016 = vmatpush1.bf16.msra.mxu0 0
    %1017 = vmatprep.subr.bf16.mxu0 0
    %1018 = vmatpush1.bf16.msra.mxu0 0
    %1019 = vmatprep.subr.bf16.mxu0 0
    %1020 = vmatpush1.bf16.msra.mxu0 0
    %1021 = vmatprep.subr.bf16.mxu0 0
    %1022 = vmatpush1.bf16.msra.mxu0 0
    %1023 = vmatprep.subr.bf16.mxu0 0
    %1024 = vmatpush1.bf16.msra.mxu0 0
    %1025 = vmatprep.subr.bf16.mxu0 0
    %1026 = vmatpush1.bf16.msra.mxu0 0
    %1027 = vmatprep.mubr.bf16.mxu0 0
    %1028 = vmatmul.mubr.bf16.gmra.mrb[0].mxu0 %v923
    %v1029 = vpop.f32.mrb[0].mxu0
    %v1030 = vadd.f32 %v945, %v1029
    %v1031 = vpop.f32.mrb[0].mxu0
    %v1032 = vpop.f32.mrb[0].mxu0
    %v1033 = vpop.f32.mrb[0].mxu0
    %1034 = vdwg.mxu0
    %1035 = vst [vmem:[#allocation14] sm:$0xff] %v1030
    // Predicated region
    $region82: #{tpu_custom_call.1} parent=1 // pred_check
      _
    $region83: #{tpu_custom_call.1} parent=1 // pred_check_branch
      %1037 = sbr.rel (0) target = $region85
    $region84: #{tpu_custom_call.1} parent=1 // pred_region
      %s1039 = ssub.s32 128, 128
      %1040 = vsyncadd [#allocation4], %s1039
      %s1042 = sshll.u32 [#allocation14], 4
      %s1043 = int_to_ptr.vmem [resolvable:$true] %s1042
      %1045 = dma.vmem_to_hbm [thread:$0]  %s1043, 128, %s13, [#allocation4]
    $region85: #{tpu_custom_call.1} parent=1 // pred_fallthru
      _
    // Predicated region
    $region86: #{tpu_custom_call.1} parent=1 // pred_check
      _
    $region87: #{tpu_custom_call.1} parent=1 // pred_check_branch
      %1047 = sbr.rel (0) target = $region89
    $region88: #{tpu_custom_call.1} parent=1 // pred_region
      %1048 = dma.done [#allocation4], 128
    $region89: #{tpu_custom_call.1} parent=1 // pred_fallthru
      _
    %1049 = vsyncpa [#allocation3], 1
    %1050 = vsyncpa [#allocation6], 1
    %1051 = vsyncpa [#allocation9], 1
    %1052 = vsyncpa [#allocation12], 1
    %1053 = vsyncpa [#allocation4], 1

// kernel: tpu_custom_call.1
$region0: #{tpu_custom_call.1}
  #allocation0 [shape = 'u32[]', space=smem, size = 0x4, offset = 0x4, fixed_abs, tag = 'smem constant byte address 0x4 - core index']
  #allocation1 [shape = 'u32[144,128]{1,0:T(1,128)}', space=vmem, size = 0x12000, scoped, tag = 'internal scratch']
  %s0 = inlined_call_operand.hbm [shape: f32[8,256], index: 0, kind: input, shape index: {}]
  %s1 = inlined_call_operand.hbm [shape: bf16[256,256], index: 1, kind: input, shape index: {}]
  %s2 = inlined_call_operand.vmem [shape: f32[1,256], index: 2, kind: input, shape index: {}]
  %s3 = inlined_call_operand.hbm [shape: bf16[256,128], index: 3, kind: input, shape index: {}]
  %s4 = inlined_call_operand.vmem [shape: f32[1,128], index: 4, kind: input, shape index: {}]
  %s5 = inlined_call_operand.hbm [shape: bf16[128,128], index: 5, kind: input, shape index: {}]
  %s6 = inlined_call_operand.vmem [shape: f32[1,128], index: 6, kind: input, shape index: {}]
  %s7 = inlined_call_operand.hbm [shape: bf16[128,128], index: 7, kind: input, shape index: {}]
  %s8 = inlined_call_operand.vmem [shape: f32[1,128], index: 8, kind: input, shape index: {}]
  %s9 = inlined_call_operand.hbm [shape: bf16[128,128], index: 9, kind: input, shape index: {}]
  %s10 = inlined_call_operand.vmem [shape: f32[1,128], index: 10, kind: input, shape index: {}]
  %s11 = inlined_call_operand.hbm [shape: bf16[128,128], index: 11, kind: input, shape index: {}]
  %s12 = inlined_call_operand.vmem [shape: f32[1,128], index: 12, kind: input, shape index: {}]
  %s13 = inlined_call_operand.hbm [shape: f32[8,128], index: 13, kind: output, shape index: {}]
  %s14 = sld [smem:[#allocation0]]
  $region90: #{tpu_custom_call.1} parent=0
    _
  %s16 = ssub.s32 1, %s14
  %s17 = scalar_select 0, %s16, %s14
  $region1: #{tpu_custom_call.1} parent=0
    #allocation2 [shape = 'u8[8192]{0}', space=vmem, size = 0x2000, scoped, tag = 'input window, operand 0, single buffered']
    #allocation3 [shape = 's32[1]{0}', space=sflag, size = 0x4, scoped, tag = 'scoped memory for tpu_custom_call.1']
    #allocation4 [shape = 's32[1]{0}', space=sflag, size = 0x4, scoped, tag = 'scoped memory for tpu_custom_call.1']
    #allocation5 [shape = 'u8[131072]{0}', space=vmem, size = 0x20000, scoped, tag = 'input window, operand 1, single buffered']
    #allocation6 [shape = 's32[1]{0}', space=sflag, size = 0x4, scoped, tag = 'scoped memory for tpu_custom_call.1']
    #allocation7 [shape = 'u8[65536]{0}', space=vmem, size = 0x10000, scoped, tag = 'input window, operand 3, single buffered']
    #allocation8 [shape = 'u8[32768]{0}', space=vmem, size = 0x8000, scoped, tag = 'input window, operand 5, single buffered']
    #allocation9 [shape = 's32[1]{0}', space=sflag, size = 0x4, scoped, tag = 'scoped memory for tpu_custom_call.1']
    #allocation10 [shape = 'u8[32768]{0}', space=vmem, size = 0x8000, scoped, tag = 'input window, operand 7, single buffered']
    #allocation11 [shape = 'u8[32768]{0}', space=vmem, size = 0x8000, scoped, tag = 'input window, operand 9, single buffered']
    #allocation12 [shape = 's32[1]{0}', space=sflag, size = 0x4, scoped, tag = 'scoped memory for tpu_custom_call.1']
    #allocation13 [shape = 'u8[32768]{0}', space=vmem, size = 0x8000, scoped, tag = 'input window, operand 11, single buffered']
    #allocation14 [shape = 'u8[4096]{0}', space=vmem, size = 0x1000, scoped, tag = 'output window, operand 0, single buffered']
    %18 = vsyncpa [#allocation3], 0
    %19 = vsyncpa [#allocation6], 0
    %20 = vsyncpa [#allocation9], 0
    %21 = vsyncpa [#allocation12], 0
    %22 = vsyncpa [#allocation4], 0
    // Predicated region
    $region2: #{tpu_custom_call.1} parent=1 // pred_check
      _
    $region3: #{tpu_custom_call.1} parent=1 // pred_check_branch
      %24 = sbr.rel (0) target = $region5
    $region4: #{tpu_custom_call.1} parent=1 // pred_region
      %s26 = ssub.s32 256, 256
      %27 = vsyncadd [#allocation3], %s26
      %s29 = sshll.u32 [#allocation2], 4
      %s30 = int_to_ptr.vmem [resolvable:$true] %s29
      %32 = dma.hbm_to_vmem [thread:$0]  %s0, 256, %s30, [#allocation3]
    $region5: #{tpu_custom_call.1} parent=1 // pred_fallthru
      _
    // Predicated region
    $region6: #{tpu_custom_call.1} parent=1 // pred_check
      _
    $region7: #{tpu_custom_call.1} parent=1 // pred_check_branch
      %34 = sbr.rel (0) target = $region9
    $region8: #{tpu_custom_call.1} parent=1 // pred_region
      %s36 = ssub.s32 4096, 4096
      %37 = vsyncadd [#allocation6], %s36
      %s38 = sshll.u32 [#allocation5], 4
      %s39 = int_to_ptr.vmem [resolvable:$true] %s38
      %44 = dma.hbm_to_vmem [thread:$0]  %s1, 4096, %s39, [#allocation6], 128, 128, 8
    $region9: #{tpu_custom_call.1} parent=1 // pred_fallthru
      _
    // Predicated region
    $region10: #{tpu_custom_call.1} parent=1 // pred_check
      _
    $region11: #{tpu_custom_call.1} parent=1 // pred_check_branch
      %46 = sbr.rel (0) target = $region13
    $region12: #{tpu_custom_call.1} parent=1 // pred_region
      _
    $region13: #{tpu_custom_call.1} parent=1 // pred_fallthru
      _
    // Predicated region
    $region14: #{tpu_custom_call.1} parent=1 // pred_check
      _
    $region15: #{tpu_custom_call.1} parent=1 // pred_check_branch
      %48 = sbr.rel (0) target = $region17
    $region16: #{tpu_custom_call.1} parent=1 // pred_region
      %s50 = ssub.s32 2048, 2048
      %51 = vsyncadd [#allocation6], %s50
      %s52 = sshll.u32 [#allocation7], 4
      %s53 = int_to_ptr.vmem [resolvable:$true] %s52
      %58 = dma.hbm_to_vmem [thread:$0]  %s3, 2048, %s53, [#allocation6], 64, 64, 4
    $region17: #{tpu_custom_call.1} parent=1 // pred_fallthru
      _
    // Predicated region
    $region18: #{tpu_custom_call.1} parent=1 // pred_check
      _
    $region19: #{tpu_custom_call.1} parent=1 // pred_check_branch
      %60 = sbr.rel (0) target = $region21
    $region20: #{tpu_custom_call.1} parent=1 // pred_region
      _
    $region21: #{tpu_custom_call.1} parent=1 // pred_fallthru
      _
    // Predicated region
    $region22: #{tpu_custom_call.1} parent=1 // pred_check
      _
    $region23: #{tpu_custom_call.1} parent=1 // pred_check_branch
      %62 = sbr.rel (0) target = $region25
    $region24: #{tpu_custom_call.1} parent=1 // pred_region
      %s64 = ssub.s32 1024, 1024
      %65 = vsyncadd [#allocation9], %s64
      %s66 = sshll.u32 [#allocation8], 4
      %s67 = int_to_ptr.vmem [resolvable:$true] %s66
      %72 = dma.hbm_to_vmem [thread:$0]  %s5, 1024, %s67, [#allocation9], 64, 64, 4
    $region25: #{tpu_custom_call.1} parent=1 // pred_fallthru
      _
    // Predicated region
    $region26: #{tpu_custom_call.1} parent=1 // pred_check
      _
    $region27: #{tpu_custom_call.1} parent=1 // pred_check_branch
      %74 = sbr.rel (0) target = $region29
    $region28: #{tpu_custom_call.1} parent=1 // pred_region
      _
    $region29: #{tpu_custom_call.1} parent=1 // pred_fallthru
      _
    // Predicated region
    $region30: #{tpu_custom_call.1} parent=1 // pred_check
      _
    $region31: #{tpu_custom_call.1} parent=1 // pred_check_branch
      %76 = sbr.rel (0) target = $region33
    $region32: #{tpu_custom_call.1} parent=1 // pred_region
      %s78 = ssub.s32 1024, 1024
      %79 = vsyncadd [#allocation9], %s78
      %s80 = sshll.u32 [#allocation10], 4
      %s81 = int_to_ptr.vmem [resolvable:$true] %s80
      %86 = dma.hbm_to_vmem [thread:$0]  %s7, 1024, %s81, [#allocation9], 64, 64, 4
    $region33: #{tpu_custom_call.1} parent=1 // pred_fallthru
      _
    // Predicated region
    $region34: #{tpu_custom_call.1} parent=1 // pred_check
      _
    $region35: #{tpu_custom_call.1} parent=1 // pred_check_branch
      %88 = sbr.rel (0) target = $region37
    $region36: #{tpu_custom_call.1} parent=1 // pred_region
      _
    $region37: #{tpu_custom_call.1} parent=1 // pred_fallthru
      _
    // Predicated region
    $region38: #{tpu_custom_call.1} parent=1 // pred_check
      _
    $region39: #{tpu_custom_call.1} parent=1 // pred_check_branch
      %90 = sbr.rel (0) target = $region41
    $region40: #{tpu_custom_call.1} parent=1 // pred_region
      %s92 = ssub.s32 1024, 1024
      %93 = vsyncadd [#allocation12], %s92
      %s94 = sshll.u32 [#allocation11], 4
      %s95 = int_to_ptr.vmem [resolvable:$true] %s94
      %100 = dma.hbm_to_vmem [thread:$0]  %s9, 1024, %s95, [#allocation12], 64, 64, 4
    $region41: #{tpu_custom_call.1} parent=1 // pred_fallthru
      _
    // Predicated region
    $region42: #{tpu_custom_call.1} parent=1 // pred_check
      _
    $region43: #{tpu_custom_call.1} parent=1 // pred_check_branch
      %102 = sbr.rel (0) target = $region45
    $region44: #{tpu_custom_call.1} parent=1 // pred_region
      _
    $region45: #{tpu_custom_call.1} parent=1 // pred_fallthru
      _
    // Predicated region
    $region46: #{tpu_custom_call.1} parent=1 // pred_check
      _
    $region47: #{tpu_custom_call.1} parent=1 // pred_check_branch
      %104 = sbr.rel (0) target = $region49
    $region48: #{tpu_custom_call.1} parent=1 // pred_region
      %s106 = ssub.s32 1024, 1024
      %107 = vsyncadd [#allocation12], %s106
      %s108 = sshll.u32 [#allocation13], 4
      %s109 = int_to_ptr.vmem [resolvable:$true] %s108
      %114 = dma.hbm_to_vmem [thread:$0]  %s11, 1024, %s109, [#allocation12], 64, 64, 4
    $region49: #{tpu_custom_call.1} parent=1 // pred_fallthru
      _
    // Predicated region
    $region50: #{tpu_custom_call.1} parent=1 // pred_check
      _
    $region51: #{tpu_custom_call.1} parent=1 // pred_check_branch
      %116 = sbr.rel (0) target = $region53
    $region52: #{tpu_custom_call.1} parent=1 // pred_region
      _
    $region53: #{tpu_custom_call.1} parent=1 // pred_fallthru
      _
    // Predicated region
    $region54: #{tpu_custom_call.1} parent=1 // pred_check
      _
    $region55: #{tpu_custom_call.1} parent=1 // pred_check_branch
      %118 = sbr.rel (0) target = $region57
    $region56: #{tpu_custom_call.1} parent=1 // pred_region
      %119 = dma.done [#allocation3], 256
    $region57: #{tpu_custom_call.1} parent=1 // pred_fallthru
      _
    // Predicated region
    $region58: #{tpu_custom_call.1} parent=1 // pred_check
      _
    $region59: #{tpu_custom_call.1} parent=1 // pred_check_branch
      %121 = sbr.rel (0) target = $region61
    $region60: #{tpu_custom_call.1} parent=1 // pred_region
      %122 = dma.done [#allocation6], 4096
    $region61: #{tpu_custom_call.1} parent=1 // pred_fallthru
      _
    // Predicated region
    $region62: #{tpu_custom_call.1} parent=1 // pred_check
      _
    $region63: #{tpu_custom_call.1} parent=1 // pred_check_branch
      %124 = sbr.rel (0) target = $region65
    $region64: #{tpu_custom_call.1} parent=1 // pred_region
      %125 = dma.done [#allocation6], 2048
    $region65: #{tpu_custom_call.1} parent=1 // pred_fallthru
      _
    // Predicated region
    $region66: #{tpu_custom_call.1} parent=1 // pred_check
      _
    $region67: #{tpu_custom_call.1} parent=1 // pred_check_branch
      %127 = sbr.rel (0) target = $region69
    $region68: #{tpu_custom_call.1} parent=1 // pred_region
      %128 = dma.done [#allocation9], 1024
    $region69: #{tpu_custom_call.1} parent=1 // pred_fallthru
      _
    // Predicated region
    $region70: #{tpu_custom_call.1} parent=1 // pred_check
      _
    $region71: #{tpu_custom_call.1} parent=1 // pred_check_branch
      %130 = sbr.rel (0) target = $region73
    $region72: #{tpu_custom_call.1} parent=1 // pred_region
      %131 = dma.done [#allocation9], 1024
    $region73: #{tpu_custom_call.1} parent=1 // pred_fallthru
      _
    // Predicated region
    $region74: #{tpu_custom_call.1} parent=1 // pred_check
      _
    $region75: #{tpu_custom_call.1} parent=1 // pred_check_branch
      %133 = sbr.rel (0) target = $region77
    $region76: #{tpu_custom_call.1} parent=1 // pred_region
      %134 = dma.done [#allocation12], 1024
    $region77: #{tpu_custom_call.1} parent=1 // pred_fallthru
      _
    // Predicated region
    $region78: #{tpu_custom_call.1} parent=1 // pred_check
      _
    $region79: #{tpu_custom_call.1} parent=1 // pred_check_branch
      %136 = sbr.rel (0) target = $region81
    $region80: #{tpu_custom_call.1} parent=1 // pred_region
      %137 = dma.done [#allocation12], 1024
    $region81: #{tpu_custom_call.1} parent=1 // pred_fallthru
      _
    %v139 = vld [vmem:[#allocation2] sm:$0xff]
    %v140 = vld [vmem:[#allocation2 + $0x8] sm:$0xff]
    %v141 = vpack.c.bf16 %v139, %v139
    %v142 = vpack.c.bf16 %v140, %v140
    %v143 = vld [vmem:[#allocation5] sm:$0xff]
    %v144 = vld [vmem:[#allocation5 + $0x8] sm:$0xff]
    %v145 = vld [vmem:[#allocation5 + $0x10] sm:$0xff]
    %v146 = vld [vmem:[#allocation5 + $0x18] sm:$0xff]
    %v147 = vld [vmem:[#allocation5 + $0x20] sm:$0xff]
    %v148 = vld [vmem:[#allocation5 + $0x28] sm:$0xff]
    %v149 = vld [vmem:[#allocation5 + $0x30] sm:$0xff]
    %v150 = vld [vmem:[#allocation5 + $0x38] sm:$0xff]
    %v151 = vld [vmem:[#allocation5 + $0x40] sm:$0xff]
    %v152 = vld [vmem:[#allocation5 + $0x48] sm:$0xff]
    %v153 = vld [vmem:[#allocation5 + $0x50] sm:$0xff]
    %v154 = vld [vmem:[#allocation5 + $0x58] sm:$0xff]
    %v155 = vld [vmem:[#allocation5 + $0x60] sm:$0xff]
    %v156 = vld [vmem:[#allocation5 + $0x68] sm:$0xff]
    %v157 = vld [vmem:[#allocation5 + $0x70] sm:$0xff]
    %v158 = vld [vmem:[#allocation5 + $0x78] sm:$0xff]
    %v159 = vld [vmem:[#allocation5 + $0x80] sm:$0xff]
    %v160 = vld [vmem:[#allocation5 + $0x88] sm:$0xff]
    %v161 = vld [vmem:[#allocation5 + $0x90] sm:$0xff]
    %v162 = vld [vmem:[#allocation5 + $0x98] sm:$0xff]
    %v163 = vld [vmem:[#allocation5 + $0xa0] sm:$0xff]
    %v164 = vld [vmem:[#allocation5 + $0xa8] sm:$0xff]
    %v165 = vld [vmem:[#allocation5 + $0xb0] sm:$0xff]
    %v166 = vld [vmem:[#allocation5 + $0xb8] sm:$0xff]
    %v167 = vld [vmem:[#allocation5 + $0xc0] sm:$0xff]
    %v168 = vld [vmem:[#allocation5 + $0xc8] sm:$0xff]
    %v169 = vld [vmem:[#allocation5 + $0xd0] sm:$0xff]
    %v170 = vld [vmem:[#allocation5 + $0xd8] sm:$0xff]
    %v171 = vld [vmem:[#allocation5 + $0xe0] sm:$0xff]
    %v172 = vld [vmem:[#allocation5 + $0xe8] sm:$0xff]
    %v173 = vld [vmem:[#allocation5 + $0xf0] sm:$0xff]
    %v174 = vld [vmem:[#allocation5 + $0xf8] sm:$0xff]
    %v175 = vld [vmem:[%s2] sm:$0x3]
    %v177 = vlaneseq
    %v178 = vshrl.u32 %v177, 7
    %v179 = vsub.s32 0, %v178
    %v180 = vrot.slane %v175, %v179
    %v181 = vlaneseq
    %v182 = vshrl.u32 %v181, 7
    %v183 = vsub.s32 1, %v182
    %v184 = vrot.slane %v175, %v183
    %v219 = vunpack.c.l.b16 %v143
    %v220 = vunpack.c.h.b16 %v143
    %v221 = vunpack.c.l.b16 %v144
    %v222 = vunpack.c.h.b16 %v144
    %v223 = vunpack.c.l.b16 %v145
    %v224 = vunpack.c.h.b16 %v145
    %v225 = vunpack.c.l.b16 %v146
    %v226 = vunpack.c.h.b16 %v146
    %v227 = vunpack.c.l.b16 %v147
    %v228 = vunpack.c.h.b16 %v147
    %v229 = vunpack.c.l.b16 %v148
    %v230 = vunpack.c.h.b16 %v148
    %v231 = vunpack.c.l.b16 %v149
    %v232 = vunpack.c.h.b16 %v149
    %v233 = vunpack.c.l.b16 %v150
    %v234 = vunpack.c.h.b16 %v150
    %v235 = vunpack.c.l.b16 %v151
    %v236 = vunpack.c.h.b16 %v151
    %v237 = vunpack.c.l.b16 %v152
    %v238 = vunpack.c.h.b16 %v152
    %v239 = vunpack.c.l.b16 %v153
    %v240 = vunpack.c.h.b16 %v153
    %v241 = vunpack.c.l.b16 %v154
    %v242 = vunpack.c.h.b16 %v154
    %v243 = vunpack.c.l.b16 %v155
    %v244 = vunpack.c.h.b16 %v155
    %v245 = vunpack.c.l.b16 %v156
    %v246 = vunpack.c.h.b16 %v156
    %v247 = vunpack.c.l.b16 %v157
    %v248 = vunpack.c.h.b16 %v157
    %v249 = vunpack.c.l.b16 %v158
    %v250 = vunpack.c.h.b16 %v158
    %v251 = vunpack.c.l.b16 %v159
    %v252 = vunpack.c.h.b16 %v159
    %v253 = vunpack.c.l.b16 %v160
    %v254 = vunpack.c.h.b16 %v160
    %v255 = vunpack.c.l.b16 %v161
    %v256 = vunpack.c.h.b16 %v161
    %v257 = vunpack.c.l.b16 %v162
    %v258 = vunpack.c.h.b16 %v162
    %v259 = vunpack.c.l.b16 %v163
    %v260 = vunpack.c.h.b16 %v163
    %v261 = vunpack.c.l.b16 %v164
    %v262 = vunpack.c.h.b16 %v164
    %v263 = vunpack.c.l.b16 %v165
    %v264 = vunpack.c.h.b16 %v165
    %v265 = vunpack.c.l.b16 %v166
    %v266 = vunpack.c.h.b16 %v166
    %v267 = vunpack.c.l.b16 %v167
    %v268 = vunpack.c.h.b16 %v167
    %v269 = vunpack.c.l.b16 %v168
    %v270 = vunpack.c.h.b16 %v168
    %v271 = vunpack.c.l.b16 %v169
    %v272 = vunpack.c.h.b16 %v169
    %v273 = vunpack.c.l.b16 %v170
    %v274 = vunpack.c.h.b16 %v170
    %v275 = vunpack.c.l.b16 %v171
    %v276 = vunpack.c.h.b16 %v171
    %v277 = vunpack.c.l.b16 %v172
    %v278 = vunpack.c.h.b16 %v172
    %v279 = vunpack.c.l.b16 %v173
    %v280 = vunpack.c.h.b16 %v173
    %v281 = vunpack.c.l.b16 %v174
    %v282 = vunpack.c.h.b16 %v174
    %v283 = vpack.c.b16 %v221, %v219
    %v284 = vpack.c.b16 %v222, %v220
    %v285 = vpack.c.b16 %v225, %v223
    %v286 = vpack.c.b16 %v226, %v224
    %v287 = vpack.c.b16 %v229, %v227
    %v288 = vpack.c.b16 %v230, %v228
    %v289 = vpack.c.b16 %v233, %v231
    %v290 = vpack.c.b16 %v234, %v232
    %v291 = vpack.c.b16 %v237, %v235
    %v292 = vpack.c.b16 %v238, %v236
    %v293 = vpack.c.b16 %v241, %v239
    %v294 = vpack.c.b16 %v242, %v240
    %v295 = vpack.c.b16 %v245, %v243
    %v296 = vpack.c.b16 %v246, %v244
    %v297 = vpack.c.b16 %v249, %v247
    %v298 = vpack.c.b16 %v250, %v248
    %v299 = vpack.c.b16 %v253, %v251
    %v300 = vpack.c.b16 %v254, %v252
    %v301 = vpack.c.b16 %v257, %v255
    %v302 = vpack.c.b16 %v258, %v256
    %v303 = vpack.c.b16 %v261, %v259
    %v304 = vpack.c.b16 %v262, %v260
    %v305 = vpack.c.b16 %v265, %v263
    %v306 = vpack.c.b16 %v266, %v264
    %v307 = vpack.c.b16 %v269, %v267
    %v308 = vpack.c.b16 %v270, %v268
    %v309 = vpack.c.b16 %v273, %v271
    %v310 = vpack.c.b16 %v274, %v272
    %v311 = vpack.c.b16 %v277, %v275
    %v312 = vpack.c.b16 %v278, %v276
    %v313 = vpack.c.b16 %v281, %v279
    %v314 = vpack.c.b16 %v282, %v280
    %347 = vmatprep.subr.bf16.mxu0 %v284
    %348 = vmatpush1.bf16.msra.mxu0 %v283
    %349 = vmatprep.subr.bf16.mxu0 %v286
    %350 = vmatpush1.bf16.msra.mxu0 %v285
    %351 = vmatprep.subr.bf16.mxu0 %v288
    %352 = vmatpush1.bf16.msra.mxu0 %v287
    %353 = vmatprep.subr.bf16.mxu0 %v290
    %354 = vmatpush1.bf16.msra.mxu0 %v289
    %355 = vmatprep.subr.bf16.mxu0 %v292
    %356 = vmatpush1.bf16.msra.mxu0 %v291
    %357 = vmatprep.subr.bf16.mxu0 %v294
    %358 = vmatpush1.bf16.msra.mxu0 %v293
    %359 = vmatprep.subr.bf16.mxu0 %v296
    %360 = vmatpush1.bf16.msra.mxu0 %v295
    %361 = vmatprep.subr.bf16.mxu0 %v298
    %362 = vmatpush1.bf16.msra.mxu0 %v297
    %363 = vmatprep.subr.bf16.mxu0 %v300
    %364 = vmatpush1.bf16.msra.mxu0 %v299
    %365 = vmatprep.subr.bf16.mxu0 %v302
    %366 = vmatpush1.bf16.msra.mxu0 %v301
    %367 = vmatprep.subr.bf16.mxu0 %v304
    %368 = vmatpush1.bf16.msra.mxu0 %v303
    %369 = vmatprep.subr.bf16.mxu0 %v306
    %370 = vmatpush1.bf16.msra.mxu0 %v305
    %371 = vmatprep.subr.bf16.mxu0 %v308
    %372 = vmatpush1.bf16.msra.mxu0 %v307
    %373 = vmatprep.subr.bf16.mxu0 %v310
    %374 = vmatpush1.bf16.msra.mxu0 %v309
    %375 = vmatprep.subr.bf16.mxu0 %v312
    %376 = vmatpush1.bf16.msra.mxu0 %v311
    %377 = vmatprep.subr.bf16.mxu0 %v314
    %378 = vmatpush1.bf16.msra.mxu0 %v313
    %379 = vmatprep.mubr.bf16.mxu0 %v142
    %380 = vmatmul.mubr.bf16.gmra.mrb[0].mxu0 %v141
    %v381 = vpop.f32.mrb[0].mxu0
    %v382 = vadd.f32 %v180, %v381
    %v383 = vpop.f32.mrb[0].mxu0
    %v384 = vadd.f32 %v184, %v383
    %v385 = vpop.f32.mrb[0].mxu0
    %v386 = vpop.f32.mrb[0].mxu0
    %387 = vdwg.mxu0
    %v388 = vmul.f32 %v382, 0.2
    %v389 = vmul.f32 %v384, 0.2
    %v390 = vmax.f32 %v382, %v388
    %v391 = vmax.f32 %v384, %v389
    %v392 = vpack.c.bf16 %v390, %v390
    %v393 = vpack.c.bf16 %v391, %v391
    %v394 = vld [vmem:[#allocation7] sm:$0xf]
    %v395 = vld [vmem:[#allocation7 + $0x4] sm:$0xf]
    %v396 = vld [vmem:[#allocation7 + $0x8] sm:$0xf]
    %v397 = vld [vmem:[#allocation7 + $0xc] sm:$0xf]
    %v398 = vld [vmem:[#allocation7 + $0x10] sm:$0xf]
    %v399 = vld [vmem:[#allocation7 + $0x14] sm:$0xf]
    %v400 = vld [vmem:[#allocation7 + $0x18] sm:$0xf]
    %v401 = vld [vmem:[#allocation7 + $0x1c] sm:$0xf]
    %v402 = vld [vmem:[#allocation7 + $0x20] sm:$0xf]
    %v403 = vld [vmem:[#allocation7 + $0x24] sm:$0xf]
    %v404 = vld [vmem:[#allocation7 + $0x28] sm:$0xf]
    %v405 = vld [vmem:[#allocation7 + $0x2c] sm:$0xf]
    %v406 = vld [vmem:[#allocation7 + $0x30] sm:$0xf]
    %v407 = vld [vmem:[#allocation7 + $0x34] sm:$0xf]
    %v408 = vld [vmem:[#allocation7 + $0x38] sm:$0xf]
    %v409 = vld [vmem:[#allocation7 + $0x3c] sm:$0xf]
    %v410 = vld [vmem:[#allocation7 + $0x40] sm:$0xf]
    %v411 = vld [vmem:[#allocation7 + $0x44] sm:$0xf]
    %v412 = vld [vmem:[#allocation7 + $0x48] sm:$0xf]
    %v413 = vld [vmem:[#allocation7 + $0x4c] sm:$0xf]
    %v414 = vld [vmem:[#allocation7 + $0x50] sm:$0xf]
    %v415 = vld [vmem:[#allocation7 + $0x54] sm:$0xf]
    %v416 = vld [vmem:[#allocation7 + $0x58] sm:$0xf]
    %v417 = vld [vmem:[#allocation7 + $0x5c] sm:$0xf]
    %v418 = vld [vmem:[#allocation7 + $0x60] sm:$0xf]
    %v419 = vld [vmem:[#allocation7 + $0x64] sm:$0xf]
    %v420 = vld [vmem:[#allocation7 + $0x68] sm:$0xf]
    %v421 = vld [vmem:[#allocation7 + $0x6c] sm:$0xf]
    %v422 = vld [vmem:[#allocation7 + $0x70] sm:$0xf]
    %v423 = vld [vmem:[#allocation7 + $0x74] sm:$0xf]
    %v424 = vld [vmem:[#allocation7 + $0x78] sm:$0xf]
    %v425 = vld [vmem:[#allocation7 + $0x7c] sm:$0xf]
    %v426 = vld [vmem:[%s4] sm:$0x1]
    %v428 = vlaneseq
    %v429 = vshrl.u32 %v428, 7
    %v430 = vsub.s32 0, %v429
    %v431 = vrot.slane %v426, %v430
    %v465 = vunpack.c.l.b16 %v394
    %v466 = vunpack.c.l.b16 %v395
    %v467 = vunpack.c.l.b16 %v396
    %v468 = vunpack.c.l.b16 %v397
    %v469 = vunpack.c.l.b16 %v398
    %v470 = vunpack.c.l.b16 %v399
    %v471 = vunpack.c.l.b16 %v400
    %v472 = vunpack.c.l.b16 %v401
    %v473 = vunpack.c.l.b16 %v402
    %v474 = vunpack.c.l.b16 %v403
    %v475 = vunpack.c.l.b16 %v404
    %v476 = vunpack.c.l.b16 %v405
    %v477 = vunpack.c.l.b16 %v406
    %v478 = vunpack.c.l.b16 %v407
    %v479 = vunpack.c.l.b16 %v408
    %v480 = vunpack.c.l.b16 %v409
    %v481 = vunpack.c.l.b16 %v410
    %v482 = vunpack.c.l.b16 %v411
    %v483 = vunpack.c.l.b16 %v412
    %v484 = vunpack.c.l.b16 %v413
    %v485 = vunpack.c.l.b16 %v414
    %v486 = vunpack.c.l.b16 %v415
    %v487 = vunpack.c.l.b16 %v416
    %v488 = vunpack.c.l.b16 %v417
    %v489 = vunpack.c.l.b16 %v418
    %v490 = vunpack.c.l.b16 %v419
    %v491 = vunpack.c.l.b16 %v420
    %v492 = vunpack.c.l.b16 %v421
    %v493 = vunpack.c.l.b16 %v422
    %v494 = vunpack.c.l.b16 %v423
    %v495 = vunpack.c.l.b16 %v424
    %v496 = vunpack.c.l.b16 %v425
    %v497 = vpack.c.b16 %v466, %v465
    %v498 = vpack.c.b16 %v468, %v467
    %v499 = vpack.c.b16 %v470, %v469
    %v500 = vpack.c.b16 %v472, %v471
    %v501 = vpack.c.b16 %v474, %v473
    %v502 = vpack.c.b16 %v476, %v475
    %v503 = vpack.c.b16 %v478, %v477
    %v504 = vpack.c.b16 %v480, %v479
    %v505 = vpack.c.b16 %v482, %v481
    %v506 = vpack.c.b16 %v484, %v483
    %v507 = vpack.c.b16 %v486, %v485
    %v508 = vpack.c.b16 %v488, %v487
    %v509 = vpack.c.b16 %v490, %v489
    %v510 = vpack.c.b16 %v492, %v491
    %v511 = vpack.c.b16 %v494, %v493
    %v512 = vpack.c.b16 %v496, %v495
    %529 = vmatprep.subr.bf16.mxu0 0
    %530 = vmatpush1.bf16.msra.mxu0 %v497
    %531 = vmatprep.subr.bf16.mxu0 0
    %532 = vmatpush1.bf16.msra.mxu0 %v498
    %533 = vmatprep.subr.bf16.mxu0 0
    %534 = vmatpush1.bf16.msra.mxu0 %v499
    %535 = vmatprep.subr.bf16.mxu0 0
    %536 = vmatpush1.bf16.msra.mxu0 %v500
    %537 = vmatprep.subr.bf16.mxu0 0
    %538 = vmatpush1.bf16.msra.mxu0 %v501
    %539 = vmatprep.subr.bf16.mxu0 0
    %540 = vmatpush1.bf16.msra.mxu0 %v502
    %541 = vmatprep.subr.bf16.mxu0 0
    %542 = vmatpush1.bf16.msra.mxu0 %v503
    %543 = vmatprep.subr.bf16.mxu0 0
    %544 = vmatpush1.bf16.msra.mxu0 %v504
    %545 = vmatprep.subr.bf16.mxu0 0
    %546 = vmatpush1.bf16.msra.mxu0 %v505
    %547 = vmatprep.subr.bf16.mxu0 0
    %548 = vmatpush1.bf16.msra.mxu0 %v506
    %549 = vmatprep.subr.bf16.mxu0 0
    %550 = vmatpush1.bf16.msra.mxu0 %v507
    %551 = vmatprep.subr.bf16.mxu0 0
    %552 = vmatpush1.bf16.msra.mxu0 %v508
    %553 = vmatprep.subr.bf16.mxu0 0
    %554 = vmatpush1.bf16.msra.mxu0 %v509
    %555 = vmatprep.subr.bf16.mxu0 0
    %556 = vmatpush1.bf16.msra.mxu0 %v510
    %557 = vmatprep.subr.bf16.mxu0 0
    %558 = vmatpush1.bf16.msra.mxu0 %v511
    %559 = vmatprep.subr.bf16.mxu0 0
    %560 = vmatpush1.bf16.msra.mxu0 %v512
    %561 = vmatprep.mubr.bf16.mxu0 %v393
    %562 = vmatmul.mubr.bf16.gmra.mrb[0].mxu0 %v392
    %v563 = vpop.f32.mrb[0].mxu0
    %v564 = vadd.f32 %v431, %v563
    %v565 = vpop.f32.mrb[0].mxu0
    %v566 = vpop.f32.mrb[0].mxu0
    %v567 = vpop.f32.mrb[0].mxu0
    %568 = vdwg.mxu0
    %v569 = vmul.f32 %v564, 0.2
    %v570 = vmax.f32 %v564, %v569
    %v571 = vpack.c.bf16 %v570, %v570
    %v572 = vld [vmem:[#allocation8] sm:$0xf]
    %v573 = vld [vmem:[#allocation8 + $0x4] sm:$0xf]
    %v574 = vld [vmem:[#allocation8 + $0x8] sm:$0xf]
    %v575 = vld [vmem:[#allocation8 + $0xc] sm:$0xf]
    %v576 = vld [vmem:[#allocation8 + $0x10] sm:$0xf]
    %v577 = vld [vmem:[#allocation8 + $0x14] sm:$0xf]
    %v578 = vld [vmem:[#allocation8 + $0x18] sm:$0xf]
    %v579 = vld [vmem:[#allocation8 + $0x1c] sm:$0xf]
    %v580 = vld [vmem:[#allocation8 + $0x20] sm:$0xf]
    %v581 = vld [vmem:[#allocation8 + $0x24] sm:$0xf]
    %v582 = vld [vmem:[#allocation8 + $0x28] sm:$0xf]
    %v583 = vld [vmem:[#allocation8 + $0x2c] sm:$0xf]
    %v584 = vld [vmem:[#allocation8 + $0x30] sm:$0xf]
    %v585 = vld [vmem:[#allocation8 + $0x34] sm:$0xf]
    %v586 = vld [vmem:[#allocation8 + $0x38] sm:$0xf]
    %v587 = vld [vmem:[#allocation8 + $0x3c] sm:$0xf]
    %v588 = vld [vmem:[%s6] sm:$0x1]
    %v590 = vlaneseq
    %v591 = vshrl.u32 %v590, 7
    %v592 = vsub.s32 0, %v591
    %v593 = vrot.slane %v588, %v592
    %v611 = vunpack.c.l.b16 %v572
    %v612 = vunpack.c.l.b16 %v573
    %v613 = vunpack.c.l.b16 %v574
    %v614 = vunpack.c.l.b16 %v575
    %v615 = vunpack.c.l.b16 %v576
    %v616 = vunpack.c.l.b16 %v577
    %v617 = vunpack.c.l.b16 %v578
    %v618 = vunpack.c.l.b16 %v579
    %v619 = vunpack.c.l.b16 %v580
    %v620 = vunpack.c.l.b16 %v581
    %v621 = vunpack.c.l.b16 %v582
    %v622 = vunpack.c.l.b16 %v583
    %v623 = vunpack.c.l.b16 %v584
    %v624 = vunpack.c.l.b16 %v585
    %v625 = vunpack.c.l.b16 %v586
    %v626 = vunpack.c.l.b16 %v587
    %v627 = vpack.c.b16 %v612, %v611
    %v628 = vpack.c.b16 %v614, %v613
    %v629 = vpack.c.b16 %v616, %v615
    %v630 = vpack.c.b16 %v618, %v617
    %v631 = vpack.c.b16 %v620, %v619
    %v632 = vpack.c.b16 %v622, %v621
    %v633 = vpack.c.b16 %v624, %v623
    %v634 = vpack.c.b16 %v626, %v625
    %643 = vmatprep.subr.bf16.mxu0 0
    %644 = vmatpush1.bf16.msra.mxu0 %v627
    %645 = vmatprep.subr.bf16.mxu0 0
    %646 = vmatpush1.bf16.msra.mxu0 %v628
    %647 = vmatprep.subr.bf16.mxu0 0
    %648 = vmatpush1.bf16.msra.mxu0 %v629
    %649 = vmatprep.subr.bf16.mxu0 0
    %650 = vmatpush1.bf16.msra.mxu0 %v630
    %651 = vmatprep.subr.bf16.mxu0 0
    %652 = vmatpush1.bf16.msra.mxu0 %v631
    %653 = vmatprep.subr.bf16.mxu0 0
    %654 = vmatpush1.bf16.msra.mxu0 %v632
    %655 = vmatprep.subr.bf16.mxu0 0
    %656 = vmatpush1.bf16.msra.mxu0 %v633
    %657 = vmatprep.subr.bf16.mxu0 0
    %658 = vmatpush1.bf16.msra.mxu0 %v634
    %659 = vmatprep.subr.bf16.mxu0 0
    %660 = vmatpush1.bf16.msra.mxu0 0
    %661 = vmatprep.subr.bf16.mxu0 0
    %662 = vmatpush1.bf16.msra.mxu0 0
    %663 = vmatprep.subr.bf16.mxu0 0
    %664 = vmatpush1.bf16.msra.mxu0 0
    %665 = vmatprep.subr.bf16.mxu0 0
    %666 = vmatpush1.bf16.msra.mxu0 0
    %667 = vmatprep.subr.bf16.mxu0 0
    %668 = vmatpush1.bf16.msra.mxu0 0
    %669 = vmatprep.subr.bf16.mxu0 0
    %670 = vmatpush1.bf16.msra.mxu0 0
    %671 = vmatprep.subr.bf16.mxu0 0
    %672 = vmatpush1.bf16.msra.mxu0 0
    %673 = vmatprep.subr.bf16.mxu0 0
    %674 = vmatpush1.bf16.msra.mxu0 0
    %675 = vmatprep.mubr.bf16.mxu0 0
    %676 = vmatmul.mubr.bf16.gmra.mrb[0].mxu0 %v571
    %v677 = vpop.f32.mrb[0].mxu0
    %v678 = vadd.f32 %v593, %v677
    %v679 = vpop.f32.mrb[0].mxu0
    %v680 = vpop.f32.mrb[0].mxu0
    %v681 = vpop.f32.mrb[0].mxu0
    %682 = vdwg.mxu0
    %v683 = vmax.f32 %v678, 0.0
    %v684 = vpack.c.bf16 %v683, %v683
    %v685 = vld [vmem:[#allocation10] sm:$0xf]
    %v686 = vld [vmem:[#allocation10 + $0x4] sm:$0xf]
    %v687 = vld [vmem:[#allocation10 + $0x8] sm:$0xf]
    %v688 = vld [vmem:[#allocation10 + $0xc] sm:$0xf]
    %v689 = vld [vmem:[#allocation10 + $0x10] sm:$0xf]
    %v690 = vld [vmem:[#allocation10 + $0x14] sm:$0xf]
    %v691 = vld [vmem:[#allocation10 + $0x18] sm:$0xf]
    %v692 = vld [vmem:[#allocation10 + $0x1c] sm:$0xf]
    %v693 = vld [vmem:[#allocation10 + $0x20] sm:$0xf]
    %v694 = vld [vmem:[#allocation10 + $0x24] sm:$0xf]
    %v695 = vld [vmem:[#allocation10 + $0x28] sm:$0xf]
    %v696 = vld [vmem:[#allocation10 + $0x2c] sm:$0xf]
    %v697 = vld [vmem:[#allocation10 + $0x30] sm:$0xf]
    %v698 = vld [vmem:[#allocation10 + $0x34] sm:$0xf]
    %v699 = vld [vmem:[#allocation10 + $0x38] sm:$0xf]
    %v700 = vld [vmem:[#allocation10 + $0x3c] sm:$0xf]
    %v701 = vld [vmem:[%s8] sm:$0x1]
    %v703 = vlaneseq
    %v704 = vshrl.u32 %v703, 7
    %v705 = vsub.s32 0, %v704
    %v706 = vrot.slane %v701, %v705
    %v724 = vunpack.c.l.b16 %v685
    %v725 = vunpack.c.l.b16 %v686
    %v726 = vunpack.c.l.b16 %v687
    %v727 = vunpack.c.l.b16 %v688
    %v728 = vunpack.c.l.b16 %v689
    %v729 = vunpack.c.l.b16 %v690
    %v730 = vunpack.c.l.b16 %v691
    %v731 = vunpack.c.l.b16 %v692
    %v732 = vunpack.c.l.b16 %v693
    %v733 = vunpack.c.l.b16 %v694
    %v734 = vunpack.c.l.b16 %v695
    %v735 = vunpack.c.l.b16 %v696
    %v736 = vunpack.c.l.b16 %v697
    %v737 = vunpack.c.l.b16 %v698
    %v738 = vunpack.c.l.b16 %v699
    %v739 = vunpack.c.l.b16 %v700
    %v740 = vpack.c.b16 %v725, %v724
    %v741 = vpack.c.b16 %v727, %v726
    %v742 = vpack.c.b16 %v729, %v728
    %v743 = vpack.c.b16 %v731, %v730
    %v744 = vpack.c.b16 %v733, %v732
    %v745 = vpack.c.b16 %v735, %v734
    %v746 = vpack.c.b16 %v737, %v736
    %v747 = vpack.c.b16 %v739, %v738
    %756 = vmatprep.subr.bf16.mxu0 0
    %757 = vmatpush1.bf16.msra.mxu0 %v740
    %758 = vmatprep.subr.bf16.mxu0 0
    %759 = vmatpush1.bf16.msra.mxu0 %v741
    %760 = vmatprep.subr.bf16.mxu0 0
    %761 = vmatpush1.bf16.msra.mxu0 %v742
    %762 = vmatprep.subr.bf16.mxu0 0
    %763 = vmatpush1.bf16.msra.mxu0 %v743
    %764 = vmatprep.subr.bf16.mxu0 0
    %765 = vmatpush1.bf16.msra.mxu0 %v744
    %766 = vmatprep.subr.bf16.mxu0 0
    %767 = vmatpush1.bf16.msra.mxu0 %v745
    %768 = vmatprep.subr.bf16.mxu0 0
    %769 = vmatpush1.bf16.msra.mxu0 %v746
    %770 = vmatprep.subr.bf16.mxu0 0
    %771 = vmatpush1.bf16.msra.mxu0 %v747
    %772 = vmatprep.subr.bf16.mxu0 0
    %773 = vmatpush1.bf16.msra.mxu0 0
    %774 = vmatprep.subr.bf16.mxu0 0
    %775 = vmatpush1.bf16.msra.mxu0 0
    %776 = vmatprep.subr.bf16.mxu0 0
    %777 = vmatpush1.bf16.msra.mxu0 0
    %778 = vmatprep.subr.bf16.mxu0 0
    %779 = vmatpush1.bf16.msra.mxu0 0
    %780 = vmatprep.subr.bf16.mxu0 0
    %781 = vmatpush1.bf16.msra.mxu0 0
    %782 = vmatprep.subr.bf16.mxu0 0
    %783 = vmatpush1.bf16.msra.mxu0 0
    %784 = vmatprep.subr.bf16.mxu0 0
    %785 = vmatpush1.bf16.msra.mxu0 0
    %786 = vmatprep.subr.bf16.mxu0 0
    %787 = vmatpush1.bf16.msra.mxu0 0
    %788 = vmatprep.mubr.bf16.mxu0 0
    %789 = vmatmul.mubr.bf16.gmra.mrb[0].mxu0 %v684
    %v790 = vpop.f32.mrb[0].mxu0
    %v791 = vadd.f32 %v706, %v790
    %v792 = vpop.f32.mrb[0].mxu0
    %v793 = vpop.f32.mrb[0].mxu0
    %v794 = vpop.f32.mrb[0].mxu0
    %795 = vdwg.mxu0
    %v796 = vsub.f32 0.0, %v791
    %v797 = vmul.f32 %v796, 1.442695
    %v798 = vpow.pop %v797
    %v799 = vadd.f32 %v798, 1.0
    %v800 = vrcp.pop %v799
    %v801 = vmul.f32 1.0, %v800
    %v802 = vsub.f32 0.0, %v801
    %v803 = vmul.f32 %v802, 1.442695
    %v804 = vpow.pop %v803
    %v805 = vadd.f32 %v804, 1.0
    %v806 = vrcp.pop %v805
    %v807 = vmul.f32 1.0, %v806
    %v808 = vmul.f32 %v570, %v807
    %v809 = vpack.c.bf16 %v808, %v808
    %v810 = vld [vmem:[#allocation11] sm:$0xf]
    %v811 = vld [vmem:[#allocation11 + $0x4] sm:$0xf]
    %v812 = vld [vmem:[#allocation11 + $0x8] sm:$0xf]
    %v813 = vld [vmem:[#allocation11 + $0xc] sm:$0xf]
    %v814 = vld [vmem:[#allocation11 + $0x10] sm:$0xf]
    %v815 = vld [vmem:[#allocation11 + $0x14] sm:$0xf]
    %v816 = vld [vmem:[#allocation11 + $0x18] sm:$0xf]
    %v817 = vld [vmem:[#allocation11 + $0x1c] sm:$0xf]
    %v818 = vld [vmem:[#allocation11 + $0x20] sm:$0xf]
    %v819 = vld [vmem:[#allocation11 + $0x24] sm:$0xf]
    %v820 = vld [vmem:[#allocation11 + $0x28] sm:$0xf]
    %v821 = vld [vmem:[#allocation11 + $0x2c] sm:$0xf]
    %v822 = vld [vmem:[#allocation11 + $0x30] sm:$0xf]
    %v823 = vld [vmem:[#allocation11 + $0x34] sm:$0xf]
    %v824 = vld [vmem:[#allocation11 + $0x38] sm:$0xf]
    %v825 = vld [vmem:[#allocation11 + $0x3c] sm:$0xf]
    %v826 = vld [vmem:[%s10] sm:$0x1]
    %v828 = vlaneseq
    %v829 = vshrl.u32 %v828, 7
    %v830 = vsub.s32 0, %v829
    %v831 = vrot.slane %v826, %v830
    %v849 = vunpack.c.l.b16 %v810
    %v850 = vunpack.c.l.b16 %v811
    %v851 = vunpack.c.l.b16 %v812
    %v852 = vunpack.c.l.b16 %v813
    %v853 = vunpack.c.l.b16 %v814
    %v854 = vunpack.c.l.b16 %v815
    %v855 = vunpack.c.l.b16 %v816
    %v856 = vunpack.c.l.b16 %v817
    %v857 = vunpack.c.l.b16 %v818
    %v858 = vunpack.c.l.b16 %v819
    %v859 = vunpack.c.l.b16 %v820
    %v860 = vunpack.c.l.b16 %v821
    %v861 = vunpack.c.l.b16 %v822
    %v862 = vunpack.c.l.b16 %v823
    %v863 = vunpack.c.l.b16 %v824
    %v864 = vunpack.c.l.b16 %v825
    %v865 = vpack.c.b16 %v850, %v849
    %v866 = vpack.c.b16 %v852, %v851
    %v867 = vpack.c.b16 %v854, %v853
    %v868 = vpack.c.b16 %v856, %v855
    %v869 = vpack.c.b16 %v858, %v857
    %v870 = vpack.c.b16 %v860, %v859
    %v871 = vpack.c.b16 %v862, %v861
    %v872 = vpack.c.b16 %v864, %v863
    %881 = vmatprep.subr.bf16.mxu0 0
    %882 = vmatpush1.bf16.msra.mxu0 %v865
    %883 = vmatprep.subr.bf16.mxu0 0
    %884 = vmatpush1.bf16.msra.mxu0 %v866
    %885 = vmatprep.subr.bf16.mxu0 0
    %886 = vmatpush1.bf16.msra.mxu0 %v867
    %887 = vmatprep.subr.bf16.mxu0 0
    %888 = vmatpush1.bf16.msra.mxu0 %v868
    %889 = vmatprep.subr.bf16.mxu0 0
    %890 = vmatpush1.bf16.msra.mxu0 %v869
    %891 = vmatprep.subr.bf16.mxu0 0
    %892 = vmatpush1.bf16.msra.mxu0 %v870
    %893 = vmatprep.subr.bf16.mxu0 0
    %894 = vmatpush1.bf16.msra.mxu0 %v871
    %895 = vmatprep.subr.bf16.mxu0 0
    %896 = vmatpush1.bf16.msra.mxu0 %v872
    %897 = vmatprep.subr.bf16.mxu0 0
    %898 = vmatpush1.bf16.msra.mxu0 0
    %899 = vmatprep.subr.bf16.mxu0 0
    %900 = vmatpush1.bf16.msra.mxu0 0
    %901 = vmatprep.subr.bf16.mxu0 0
    %902 = vmatpush1.bf16.msra.mxu0 0
    %903 = vmatprep.subr.bf16.mxu0 0
    %904 = vmatpush1.bf16.msra.mxu0 0
    %905 = vmatprep.subr.bf16.mxu0 0
    %906 = vmatpush1.bf16.msra.mxu0 0
    %907 = vmatprep.subr.bf16.mxu0 0
    %908 = vmatpush1.bf16.msra.mxu0 0
    %909 = vmatprep.subr.bf16.mxu0 0
    %910 = vmatpush1.bf16.msra.mxu0 0
    %911 = vmatprep.subr.bf16.mxu0 0
    %912 = vmatpush1.bf16.msra.mxu0 0
    %913 = vmatprep.mubr.bf16.mxu0 0
    %914 = vmatmul.mubr.bf16.gmra.mrb[0].mxu0 %v809
    %v915 = vpop.f32.mrb[0].mxu0
    %v916 = vadd.f32 %v831, %v915
    %v917 = vpop.f32.mrb[0].mxu0
    %v918 = vpop.f32.mrb[0].mxu0
    %v919 = vpop.f32.mrb[0].mxu0
    %920 = vdwg.mxu0
    %v921 = vmul.f32 %v916, 0.2
    %v922 = vmax.f32 %v916, %v921
    %v923 = vpack.c.bf16 %v922, %v922
    %v924 = vld [vmem:[#allocation13] sm:$0xf]
    %v925 = vld [vmem:[#allocation13 + $0x4] sm:$0xf]
    %v926 = vld [vmem:[#allocation13 + $0x8] sm:$0xf]
    %v927 = vld [vmem:[#allocation13 + $0xc] sm:$0xf]
    %v928 = vld [vmem:[#allocation13 + $0x10] sm:$0xf]
    %v929 = vld [vmem:[#allocation13 + $0x14] sm:$0xf]
    %v930 = vld [vmem:[#allocation13 + $0x18] sm:$0xf]
    %v931 = vld [vmem:[#allocation13 + $0x1c] sm:$0xf]
    %v932 = vld [vmem:[#allocation13 + $0x20] sm:$0xf]
    %v933 = vld [vmem:[#allocation13 + $0x24] sm:$0xf]
    %v934 = vld [vmem:[#allocation13 + $0x28] sm:$0xf]
    %v935 = vld [vmem:[#allocation13 + $0x2c] sm:$0xf]
    %v936 = vld [vmem:[#allocation13 + $0x30] sm:$0xf]
    %v937 = vld [vmem:[#allocation13 + $0x34] sm:$0xf]
    %v938 = vld [vmem:[#allocation13 + $0x38] sm:$0xf]
    %v939 = vld [vmem:[#allocation13 + $0x3c] sm:$0xf]
    %v940 = vld [vmem:[%s12] sm:$0x1]
    %v942 = vlaneseq
    %v943 = vshrl.u32 %v942, 7
    %v944 = vsub.s32 0, %v943
    %v945 = vrot.slane %v940, %v944
    %v963 = vunpack.c.l.b16 %v924
    %v964 = vunpack.c.l.b16 %v925
    %v965 = vunpack.c.l.b16 %v926
    %v966 = vunpack.c.l.b16 %v927
    %v967 = vunpack.c.l.b16 %v928
    %v968 = vunpack.c.l.b16 %v929
    %v969 = vunpack.c.l.b16 %v930
    %v970 = vunpack.c.l.b16 %v931
    %v971 = vunpack.c.l.b16 %v932
    %v972 = vunpack.c.l.b16 %v933
    %v973 = vunpack.c.l.b16 %v934
    %v974 = vunpack.c.l.b16 %v935
    %v975 = vunpack.c.l.b16 %v936
    %v976 = vunpack.c.l.b16 %v937
    %v977 = vunpack.c.l.b16 %v938
    %v978 = vunpack.c.l.b16 %v939
    %v979 = vpack.c.b16 %v964, %v963
    %v980 = vpack.c.b16 %v966, %v965
    %v981 = vpack.c.b16 %v968, %v967
    %v982 = vpack.c.b16 %v970, %v969
    %v983 = vpack.c.b16 %v972, %v971
    %v984 = vpack.c.b16 %v974, %v973
    %v985 = vpack.c.b16 %v976, %v975
    %v986 = vpack.c.b16 %v978, %v977
    %995 = vmatprep.subr.bf16.mxu0 0
    %996 = vmatpush1.bf16.msra.mxu0 %v979
    %997 = vmatprep.subr.bf16.mxu0 0
    %998 = vmatpush1.bf16.msra.mxu0 %v980
    %999 = vmatprep.subr.bf16.mxu0 0
    %1000 = vmatpush1.bf16.msra.mxu0 %v981
    %1001 = vmatprep.subr.bf16.mxu0 0
    %1002 = vmatpush1.bf16.msra.mxu0 %v982
    %1003 = vmatprep.subr.bf16.mxu0 0
    %1004 = vmatpush1.bf16.msra.mxu0 %v983
    %1005 = vmatprep.subr.bf16.mxu0 0
    %1006 = vmatpush1.bf16.msra.mxu0 %v984
    %1007 = vmatprep.subr.bf16.mxu0 0
    %1008 = vmatpush1.bf16.msra.mxu0 %v985
    %1009 = vmatprep.subr.bf16.mxu0 0
    %1010 = vmatpush1.bf16.msra.mxu0 %v986
    %1011 = vmatprep.subr.bf16.mxu0 0
    %1012 = vmatpush1.bf16.msra.mxu0 0
    %1013 = vmatprep.subr.bf16.mxu0 0
    %1014 = vmatpush1.bf16.msra.mxu0 0
    %1015 = vmatprep.subr.bf16.mxu0 0
    %1016 = vmatpush1.bf16.msra.mxu0 0
    %1017 = vmatprep.subr.bf16.mxu0 0
    %1018 = vmatpush1.bf16.msra.mxu0 0
    %1019 = vmatprep.subr.bf16.mxu0 0
    %1020 = vmatpush1.bf16.msra.mxu0 0
    %1021 = vmatprep.subr.bf16.mxu0 0
    %1022 = vmatpush1.bf16.msra.mxu0 0
    %1023 = vmatprep.subr.bf16.mxu0 0
    %1024 = vmatpush1.bf16.msra.mxu0 0
    %1025 = vmatprep.subr.bf16.mxu0 0
    %1026 = vmatpush1.bf16.msra.mxu0 0
    %1027 = vmatprep.mubr.bf16.mxu0 0
    %1028 = vmatmul.mubr.bf16.gmra.mrb[0].mxu0 %v923
    %v1029 = vpop.f32.mrb[0].mxu0
    %v1030 = vadd.f32 %v945, %v1029
    %v1031 = vpop.f32.mrb[0].mxu0
    %v1032 = vpop.f32.mrb[0].mxu0
    %v1033 = vpop.f32.mrb[0].mxu0
    %1034 = vdwg.mxu0
    %1035 = vst [vmem:[#allocation14] sm:$0xff] %v1030
    // Predicated region
    $region82: #{tpu_custom_call.1} parent=1 // pred_check
      _
    $region83: #{tpu_custom_call.1} parent=1 // pred_check_branch
      %1037 = sbr.rel (0) target = $region85
    $region84: #{tpu_custom_call.1} parent=1 // pred_region
      %s1039 = ssub.s32 128, 128
      %1040 = vsyncadd [#allocation4], %s1039
      %s1042 = sshll.u32 [#allocation14], 4
      %s1043 = int_to_ptr.vmem [resolvable:$true] %s1042
      %1045 = dma.vmem_to_hbm [thread:$0]  %s1043, 128, %s13, [#allocation4]
    $region85: #{tpu_custom_call.1} parent=1 // pred_fallthru
      _
    // Predicated region
    $region86: #{tpu_custom_call.1} parent=1 // pred_check
      _
    $region87: #{tpu_custom_call.1} parent=1 // pred_check_branch
      %1047 = sbr.rel (0) target = $region89
    $region88: #{tpu_custom_call.1} parent=1 // pred_region
      %1048 = dma.done [#allocation4], 128
    $region89: #{tpu_custom_call.1} parent=1 // pred_fallthru
      _
    %1049 = vsyncpa [#allocation3], 1
    %1050 = vsyncpa [#allocation6], 1
    %1051 = vsyncpa [#allocation9], 1
    %1052 = vsyncpa [#allocation12], 1
    %1053 = vsyncpa [#allocation4], 1

</llo_original>
